<compile_context>
chip_gen: v5e
topology: v5e:2x2
jax: 0.10.0
libtpu: 0.0.40
codegen_flags: <defaults>
</compile_context>

<pallas_src>
import jax
import jax.numpy as jnp
from jax.experimental import pallas as pl
from jax.experimental.pallas import tpu as pltpu

NUM_CLASSES = 5      # model_config['modules']['uresnet_ppn_type']['num_classes']
POINT_FEATS = 5      # [x, y, z, batch_id, value]
HIDDEN = 32          # synthetic segmentation-head hidden width

# ---- merged output slab row layout (feature-major, lane-dense) -------------
ROW_SEG = 0                        # 5 rows: segmentation logits
ROW_PTS = ROW_SEG + NUM_CLASSES    # 5 rows: echoed point columns
ROW_OH = ROW_PTS + POINT_FEATS     # 5 rows: one_hot(argmax(logits))
ROW_FPTS = ROW_OH + NUM_CLASSES    # 5 rows: "final" point columns (masked)
ROW_FCLS = ROW_FPTS + POINT_FEATS  # 1 row : "final" class id (masked)
ROW_FCID = ROW_FCLS + 1            # 1 row : "final" cluster id (masked)
ROW_PRED = ROW_FCID + 1            # 1 row : argmax class (f32-encoded int)
ROW_MASK = ROW_PRED + 1            # 1 row : track mask (0.0 / 1.0)
SLAB_ROWS = ROW_MASK + 1           # = 24  (3 full sublane groups)

# ---- tiling -----------------------------------------------------------------
MAX_TILE = 32768         # per-step VMEM (2x in + 2x out + intermediates) ~18 MB
SINGLE_STEP_MAX = 1024   # small-N latency regime: one 128-aligned step
TARGET_STEPS = 2         # v7x has 2 TensorCores: keep >=2 (even) steps


def _cdiv(a, b):
    return -(-a // b)


def _choose_tiling(n):
    """Returns (tile, n_pad). tile is a multiple of 128, n_pad = tile * steps."""
    n128 = 128 * _cdiv(n, 128)
    if n128 <= SINGLE_STEP_MAX:
        return n128, n128                       # single latency-bound step
    steps = max(TARGET_STEPS, _cdiv(n128, MAX_TILE))
    if steps % 2:
        steps += 1                              # even step count balances 2 TCs
    tile = 128 * _cdiv(_cdiv(n128, steps), 128)
    return tile, tile * steps


def _chain_kernel(ptsT_ref, w1t_ref, b1_ref, w2t_ref, b2_ref, out_ref):
    """Fused hot path for one lane-tile of points (feature-major layout).

    ptsT_ref   : (F, T)   point columns [x, y, z, batch, value] x T points
    w1t/b1     : (H, F), (H, 1)   MLP layer 1 (transposed weights)
    w2t/b2     : (C, H), (C, 1)   MLP layer 2 (transposed weights)
    out_ref    : (24, T)  merged slab (see ROW_* layout above)
    """
    ptsT = ptsT_ref[...]                                             # (F, T)

    # --- synthetic segmentation head (stands in for PPNUResNet) -------------
    h = jnp.dot(w1t_ref[...], ptsT,
                precision=jax.lax.Precision.HIGHEST,
                preferred_element_type=jnp.float32)
    h = jnp.maximum(h + b1_ref[...], 0.0)                            # (H, T)
    logits = jnp.dot(w2t_ref[...], h,
                     precision=jax.lax.Precision.HIGHEST,
                     preferred_element_type=jnp.float32)
    logits = logits + b2_ref[...]                                    # (C, T)

    # --- one_hot(argmax) with first-max tie-break (matches jnp.argmax) ------
    c = logits.shape[0]
    m = jnp.max(logits, axis=0, keepdims=True)                       # (1, T)
    idx = jax.lax.broadcasted_iota(jnp.int32, logits.shape, 0)       # (C, T)
    first_max = jnp.min(jnp.where(logits == m, idx, c),
                        axis=0, keepdims=True)                       # (1, T)
    onehot = (idx == first_max).astype(jnp.float32)                  # (C, T)
    pred_f = first_max.astype(jnp.float32)                           # (1, T)

    # --- track-like selection (classes 0/1) + "final" rows with -1 sentinel -
    track = (first_max == 0) | (first_max == 1)                      # (1, T)
    final_pts = jnp.where(track, ptsT, -1.0)                         # (F, T)
    final_cls = jnp.where(track, pred_f, -1.0)                       # (1, T)

    # --- single merged slab: one output DMA stream per step ------------------
    out_ref[ROW_SEG:ROW_SEG + NUM_CLASSES, :] = logits
    out_ref[ROW_PTS:ROW_PTS + POINT_FEATS, :] = ptsT
    out_ref[ROW_OH:ROW_OH + NUM_CLASSES, :] = onehot
    out_ref[ROW_FPTS:ROW_FPTS + POINT_FEATS, :] = final_pts
    out_ref[ROW_FCLS:ROW_FCLS + 1, :] = final_cls
    out_ref[ROW_FCID:ROW_FCID + 1, :] = final_cls   # cluster id == class (TODO)
    out_ref[ROW_PRED:ROW_PRED + 1, :] = pred_f
    out_ref[ROW_MASK:ROW_MASK + 1, :] = track.astype(jnp.float32)


def chain_forward(points, w1, b1, w2, b2):
    """Pallas hot path + thin JAX glue.

    points : (N, F) float32, rows = [x, y, z, batch_id, value]
    w1,b1,w2,b2 : (F,H), (1,H), (H,C), (1,C) segmentation-head params
    Returns dict mirroring the torch module output; the `*_T` entries are the
    lane-dense feature-major slabs straight out of the kernel (zero-copy row
    slices), the row-major entries are one-relayout parity views.
    """
    n, f = points.shape
    c, hdim = NUM_CLASSES, HIDDEN

    tile, n_pad = _choose_tiling(n)

    # Single relayout to feature-major / lane-dense layout (points on lanes).
    # Kept in the wrapper on purpose — see v3 header note on why the in-kernel
    # transpose of a (T, 5) block is a net loss on v7x.
    pts_T = points.T                                   # (F, N)
    if n_pad != n:
        pts_T = jnp.pad(pts_T, ((0, 0), (0, n_pad - n)))
    w1t = w1.T                                         # (H, F)
    w2t = w2.T                                         # (C, H)
    b1c = b1.reshape(hdim, 1)                          # (H, 1)
    b2c = b2.reshape(c, 1)                             # (C, 1)

    slab = pl.pallas_call(
        _chain_kernel,
        out_shape=jax.ShapeDtypeStruct((SLAB_ROWS, n_pad), jnp.float32),
        grid=(n_pad // tile,),
        in_specs=[
            pl.BlockSpec((f, tile), lambda i: (0, i)),
            pl.BlockSpec((hdim, f), lambda i: (0, 0)),
            pl.BlockSpec((hdim, 1), lambda i: (0, 0)),
            pl.BlockSpec((c, hdim), lambda i: (0, 0)),
            pl.BlockSpec((c, 1), lambda i: (0, 0)),
        ],
        out_specs=pl.BlockSpec((SLAB_ROWS, tile), lambda i: (0, i)),
        compiler_params=pltpu.CompilerParams(
            dimension_semantics=("parallel",),
            vmem_limit_bytes=48 * 1024 * 1024),
    )(pts_T, w1t, b1c, w2t, b2c)

    # Drop pad columns BEFORE any downstream consumer (pad cols hold garbage).
    slab = slab[:, :n]

    # canonical lane-dense outputs: zero-copy row slices of the kernel slab
    seg_T = slab[ROW_SEG:ROW_SEG + c]                  # (C, N)
    one_hot_T = slab[ROW_PTS:ROW_OH + c]               # (F+C, N) [points|onehot]
    final_T = slab[ROW_FPTS:ROW_FCID + 1]              # (F+2, N) [pts|cls|cid]
    pred_class = slab[ROW_PRED].astype(jnp.int32)      # (N,)
    track_mask = slab[ROW_MASK] > 0.5                  # (N,) bool

    # row-major module-parity views (single relayout each; layout plumbing only)
    seg = seg_T.T                                      # (N, C)
    one_hot = one_hot_T.T                              # (N, F+C)
    final_rows = final_T.T                             # (N, F+2)

    return {
        "segmentation": [seg],
        "one_hot": one_hot,
        "pred_class": pred_class,
        "final": [final_rows],
        "final_mask": track_mask,
        "segmentation_T": seg_T,
        "one_hot_T": one_hot_T,
        "final_T": final_T,
    }


if __name__ == "__main__":
    key = jax.random.PRNGKey(0)
    k_coord, k_val, k_batch, k_w1, k_b1, k_w2, k_b2 = jax.random.split(key, 7)

    N, F = 300, POINT_FEATS   # 300 sparse 3D points (exercises the 128-pad tail)
    coords = jax.random.uniform(k_coord, (N, 3), jnp.float32, 0.0, 16.0)
    batch_id = (jax.random.uniform(k_batch, (N, 1)) > 0.5).astype(jnp.float32)
    value = jax.random.uniform(k_val, (N, 1), jnp.float32, 0.0, 1.0)
    points = jnp.concatenate([coords, batch_id, value], axis=1)      # (N, 5)

    # deterministic synthetic segmentation-head parameters
    w1 = jax.random.normal(k_w1, (F, HIDDEN), jnp.float32) * 0.1
    b1 = jax.random.normal(k_b1, (1, HIDDEN), jnp.float32) * 0.01
    w2 = jax.random.normal(k_w2, (HIDDEN, NUM_CLASSES), jnp.float32) * 0.1
    b2 = jax.random.normal(k_b2, (1, NUM_CLASSES), jnp.float32) * 0.01

    out = jax.jit(chain_forward)(points, w1, b1, w2, b2)
    jax.block_until_ready(out)

    # ---- sanity checks vs plain-JAX reference ------------------------------
    seg = out["segmentation"][0]
    oh = out["one_hot"]
    pred = out["pred_class"]
    final_rows = out["final"][0]
    mask = out["final_mask"]
    assert seg.shape == (N, NUM_CLASSES)
    assert oh.shape == (N, F + NUM_CLASSES)
    assert final_rows.shape == (N, F + 2)

    hi = jax.lax.Precision.HIGHEST
    ref_h = jnp.maximum(jnp.dot(points, w1, precision=hi) + b1, 0.0)
    ref_seg = jnp.dot(ref_h, w2, precision=hi) + b2
    assert bool(jnp.allclose(seg, ref_seg, atol=1e-4, rtol=1e-4))

    ref_pred = jnp.argmax(ref_seg, axis=1)
    assert bool(jnp.all(pred == ref_pred))

    ref_oh = jax.nn.one_hot(ref_pred, NUM_CLASSES, dtype=jnp.float32)
    assert bool(jnp.allclose(oh[:, :F], points))
    assert bool(jnp.allclose(oh[:, F:], ref_oh))

    ref_mask = (ref_pred == 0) | (ref_pred == 1)
    assert bool(jnp.all(mask == ref_mask))
    ref_final = jnp.concatenate(
        [points,
         ref_pred[:, None].astype(jnp.float32),
         ref_pred[:, None].astype(jnp.float32)], axis=1)
    ref_final = jnp.where(ref_mask[:, None], ref_final, -1.0)
    assert bool(jnp.allclose(final_rows, ref_final, atol=1e-5))

    print("KERNEL_OK")
</pallas_src>

<mosaic_0001>
module attributes {stable_mosaic.version = 11 : i64} {
  func.func @_chain_kernel(%arg0: i32, %arg1: memref<5x384xf32, #tpu.memory_space<vmem>>, %arg2: memref<32x5xf32, #tpu.memory_space<vmem>>, %arg3: memref<32x1xf32, #tpu.memory_space<vmem>>, %arg4: memref<5x32xf32, #tpu.memory_space<vmem>>, %arg5: memref<5x1xf32, #tpu.memory_space<vmem>>, %arg6: memref<24x384xf32, #tpu.memory_space<vmem>>) attributes {dimension_semantics = [#tpu.dimension_semantics<parallel>], iteration_bounds = array<i64: 1>, scalar_prefetch = 0 : i64, scratch_operands = 0 : i64, tpu.core_type = #tpu.core_type<tc>, window_params = [{transform_indices = @transform_0, window_bounds = array<i64: 5, 384>}, {pipeline_mode = #tpu.pipeline_mode<synchronous>, transform_indices = @transform_1, window_bounds = array<i64: 32, 5>}, {pipeline_mode = #tpu.pipeline_mode<synchronous>, transform_indices = @transform_2, window_bounds = array<i64: 32, 1>}, {pipeline_mode = #tpu.pipeline_mode<synchronous>, transform_indices = @transform_3, window_bounds = array<i64: 5, 32>}, {pipeline_mode = #tpu.pipeline_mode<synchronous>, transform_indices = @transform_4, window_bounds = array<i64: 5, 1>}, {transform_indices = @transform_5, window_bounds = array<i64: 24, 384>}]} {
    %c0 = arith.constant 0 : index
    %c0_0 = arith.constant 0 : index
    %0 = vector.load %arg1[%c0, %c0_0] : memref<5x384xf32, #tpu.memory_space<vmem>>, vector<5x384xf32>
    %c0_1 = arith.constant 0 : index
    %c0_2 = arith.constant 0 : index
    %1 = vector.load %arg2[%c0_1, %c0_2] : memref<32x5xf32, #tpu.memory_space<vmem>>, vector<32x5xf32>
    %cst = arith.constant dense<0.000000e+00> : vector<32x384xf32>
    %2 = tpu.matmul %1, %0, %cst {dimension_numbers = #tpu.dot_dimension_numbers<[1], [0], [0], [1], [0, 0, 1, 1], [], []>, precision = #tpu.contract_precision<fp32>} : vector<32x5xf32>, vector<5x384xf32>, vector<32x384xf32> -> vector<32x384xf32>
    %c0_3 = arith.constant 0 : index
    %c0_4 = arith.constant 0 : index
    %3 = vector.load %arg3[%c0_3, %c0_4] : memref<32x1xf32, #tpu.memory_space<vmem>>, vector<32x1xf32>
    %4 = vector.broadcast %3 : vector<32x1xf32> to vector<32x384xf32>
    %5 = arith.addf %2, %4 : vector<32x384xf32>
    %cst_5 = arith.constant 0.000000e+00 : f32
    %6 = vector.broadcast %cst_5 : f32 to vector<32x384xf32>
    %7 = arith.maximumf %5, %6 : vector<32x384xf32>
    %c0_6 = arith.constant 0 : index
    %c0_7 = arith.constant 0 : index
    %8 = vector.load %arg4[%c0_6, %c0_7] : memref<5x32xf32, #tpu.memory_space<vmem>>, vector<5x32xf32>
    %cst_8 = arith.constant dense<0.000000e+00> : vector<5x384xf32>
    %9 = tpu.matmul %8, %7, %cst_8 {dimension_numbers = #tpu.dot_dimension_numbers<[1], [0], [0], [1], [0, 0, 1, 1], [], []>, precision = #tpu.contract_precision<fp32>} : vector<5x32xf32>, vector<32x384xf32>, vector<5x384xf32> -> vector<5x384xf32>
    %c0_9 = arith.constant 0 : index
    %c0_10 = arith.constant 0 : index
    %10 = vector.load %arg5[%c0_9, %c0_10] : memref<5x1xf32, #tpu.memory_space<vmem>>, vector<5x1xf32>
    %11 = vector.broadcast %10 : vector<5x1xf32> to vector<5x384xf32>
    %12 = arith.addf %9, %11 : vector<5x384xf32>
    %cst_11 = arith.constant dense<0xFF800000> : vector<384xf32>
    %13 = vector.multi_reduction <maximumf>, %12, %cst_11 [0] : vector<5x384xf32> to vector<384xf32>
    %14 = vector.shape_cast %13 : vector<384xf32> to vector<1x384xf32>
    %15 = tpu.iota {dimensions = array<i32: 0>} : vector<5x384xi32>
    %16 = vector.broadcast %14 : vector<1x384xf32> to vector<5x384xf32>
    %17 = arith.cmpf oeq, %12, %16 : vector<5x384xf32>
    %c5_i32 = arith.constant 5 : i32
    %18 = vector.broadcast %c5_i32 : i32 to vector<5x384xi32>
    %19 = arith.select %17, %15, %18 : vector<5x384xi1>, vector<5x384xi32>
    %cst_12 = arith.constant dense<2147483647> : vector<384xi32>
    %20 = vector.multi_reduction <minsi>, %19, %cst_12 [0] : vector<5x384xi32> to vector<384xi32>
    %21 = vector.shape_cast %20 : vector<384xi32> to vector<1x384xi32>
    %22 = vector.broadcast %21 : vector<1x384xi32> to vector<5x384xi32>
    %23 = arith.cmpi eq, %15, %22 : vector<5x384xi32>
    %24 = arith.extui %23 : vector<5x384xi1> to vector<5x384xi32>
    %25 = arith.sitofp %24 : vector<5x384xi32> to vector<5x384xf32>
    %26 = arith.sitofp %21 : vector<1x384xi32> to vector<1x384xf32>
    %c0_i32 = arith.constant 0 : i32
    %27 = vector.broadcast %c0_i32 : i32 to vector<1x384xi32>
    %28 = arith.cmpi eq, %21, %27 : vector<1x384xi32>
    %c1_i32 = arith.constant 1 : i32
    %29 = vector.broadcast %c1_i32 : i32 to vector<1x384xi32>
    %30 = arith.cmpi eq, %21, %29 : vector<1x384xi32>
    %31 = arith.ori %28, %30 : vector<1x384xi1>
    %cst_13 = arith.constant -1.000000e+00 : f32
    %32 = vector.shape_cast %31 : vector<1x384xi1> to vector<1x384xi1>
    %33 = vector.broadcast %32 : vector<1x384xi1> to vector<5x384xi1>
    %34 = vector.broadcast %cst_13 : f32 to vector<5x384xf32>
    %35 = arith.select %33, %0, %34 : vector<5x384xi1>, vector<5x384xf32>
    %cst_14 = arith.constant -1.000000e+00 : f32
    %36 = vector.broadcast %cst_14 : f32 to vector<1x384xf32>
    %37 = arith.select %31, %26, %36 : vector<1x384xi1>, vector<1x384xf32>
    %c0_15 = arith.constant 0 : index
    %c0_16 = arith.constant 0 : index
    %38 = vector.load %arg6[%c0_15, %c0_16] : memref<24x384xf32, #tpu.memory_space<vmem>>, vector<5x384xf32>
    tpu.vector_store %arg6[%c0_15, %c0_16], %12 {strides = array<i32>} : memref<24x384xf32, #tpu.memory_space<vmem>>, vector<5x384xf32>,
    %c5 = arith.constant 5 : index
    %c0_17 = arith.constant 0 : index
    %39 = vector.load %arg6[%c5, %c0_17] : memref<24x384xf32, #tpu.memory_space<vmem>>, vector<5x384xf32>
    tpu.vector_store %arg6[%c5, %c0_17], %0 {strides = array<i32>} : memref<24x384xf32, #tpu.memory_space<vmem>>, vector<5x384xf32>,
    %c10 = arith.constant 10 : index
    %c0_18 = arith.constant 0 : index
    %40 = vector.load %arg6[%c10, %c0_18] : memref<24x384xf32, #tpu.memory_space<vmem>>, vector<5x384xf32>
    tpu.vector_store %arg6[%c10, %c0_18], %25 {strides = array<i32>} : memref<24x384xf32, #tpu.memory_space<vmem>>, vector<5x384xf32>,
    %c15 = arith.constant 15 : index
    %c0_19 = arith.constant 0 : index
    %41 = vector.load %arg6[%c15, %c0_19] : memref<24x384xf32, #tpu.memory_space<vmem>>, vector<5x384xf32>
    tpu.vector_store %arg6[%c15, %c0_19], %35 {strides = array<i32>} : memref<24x384xf32, #tpu.memory_space<vmem>>, vector<5x384xf32>,
    %c20 = arith.constant 20 : index
    %c0_20 = arith.constant 0 : index
    %42 = vector.load %arg6[%c20, %c0_20] : memref<24x384xf32, #tpu.memory_space<vmem>>, vector<1x384xf32>
    tpu.vector_store %arg6[%c20, %c0_20], %37 {strides = array<i32>} : memref<24x384xf32, #tpu.memory_space<vmem>>, vector<1x384xf32>,
    %c21 = arith.constant 21 : index
    %c0_21 = arith.constant 0 : index
    %43 = vector.load %arg6[%c21, %c0_21] : memref<24x384xf32, #tpu.memory_space<vmem>>, vector<1x384xf32>
    tpu.vector_store %arg6[%c21, %c0_21], %37 {strides = array<i32>} : memref<24x384xf32, #tpu.memory_space<vmem>>, vector<1x384xf32>,
    %c22 = arith.constant 22 : index
    %c0_22 = arith.constant 0 : index
    %44 = vector.load %arg6[%c22, %c0_22] : memref<24x384xf32, #tpu.memory_space<vmem>>, vector<1x384xf32>
    tpu.vector_store %arg6[%c22, %c0_22], %26 {strides = array<i32>} : memref<24x384xf32, #tpu.memory_space<vmem>>, vector<1x384xf32>,
    %45 = arith.extui %31 : vector<1x384xi1> to vector<1x384xi32>
    %46 = arith.sitofp %45 : vector<1x384xi32> to vector<1x384xf32>
    %c23 = arith.constant 23 : index
    %c0_23 = arith.constant 0 : index
    %47 = vector.load %arg6[%c23, %c0_23] : memref<24x384xf32, #tpu.memory_space<vmem>>, vector<1x384xf32>
    tpu.vector_store %arg6[%c23, %c0_23], %46 {strides = array<i32>} : memref<24x384xf32, #tpu.memory_space<vmem>>, vector<1x384xf32>,
    return
  }
  func.func @transform_0(%arg0: i32) -> (i32, i32) {
    %c0_i32 = arith.constant 0 : i32
    %c0_i32_0 = arith.constant 0 : i32
    return %c0_i32, %arg0 : i32, i32
  }
  func.func @transform_1(%arg0: i32) -> (i32, i32) {
    %c0_i32 = arith.constant 0 : i32
    %c0_i32_0 = arith.constant 0 : i32
    %c0_i32_1 = arith.constant 0 : i32
    return %c0_i32, %c0_i32_0 : i32, i32
  }
  func.func @transform_2(%arg0: i32) -> (i32, i32) {
    %c0_i32 = arith.constant 0 : i32
    %c0_i32_0 = arith.constant 0 : i32
    %c0_i32_1 = arith.constant 0 : i32
    return %c0_i32, %c0_i32_0 : i32, i32
  }
  func.func @transform_3(%arg0: i32) -> (i32, i32) {
    %c0_i32 = arith.constant 0 : i32
    %c0_i32_0 = arith.constant 0 : i32
    %c0_i32_1 = arith.constant 0 : i32
    return %c0_i32, %c0_i32_0 : i32, i32
  }
  func.func @transform_4(%arg0: i32) -> (i32, i32) {
    %c0_i32 = arith.constant 0 : i32
    %c0_i32_0 = arith.constant 0 : i32
    %c0_i32_1 = arith.constant 0 : i32
    return %c0_i32, %c0_i32_0 : i32, i32
  }
  func.func @transform_5(%arg0: i32) -> (i32, i32) {
    %c0_i32 = arith.constant 0 : i32
    %c0_i32_0 = arith.constant 0 : i32
    return %c0_i32, %arg0 : i32, i32
  }
}

</mosaic_0001>

<llo_original>
// kernel: chain_forward.1
$region0: #{chain_forward.1}
  #allocation0 [shape = 'u32[]', space=smem, size = 0x4, offset = 0x4, fixed_abs, tag = 'smem constant byte address 0x4 - core index']
  #allocation1 [shape = 'u32[72,128]{1,0:T(1,128)}', space=vmem, size = 0x9000, scoped, tag = 'internal scratch']
  %s0 = inlined_call_operand.vmem [shape: f32[5,384], index: 0, kind: input, shape index: {}]
  %s1 = inlined_call_operand.vmem [shape: f32[32,5], index: 1, kind: input, shape index: {}]
  %s2 = inlined_call_operand.vmem [shape: f32[32,1], index: 2, kind: input, shape index: {}]
  %s3 = inlined_call_operand.vmem [shape: f32[5,32], index: 3, kind: input, shape index: {}]
  %s4 = inlined_call_operand.vmem [shape: f32[5,1], index: 4, kind: input, shape index: {}]
  %s5 = inlined_call_operand.vmem [shape: f32[24,384], index: 5, kind: output, shape index: {}]
  %s6 = sld [smem:[#allocation0]]
  $region30: #{chain_forward.1} parent=0
    _
  %s8 = ssub.s32 1, %s6
  %s9 = scalar_select 0, %s8, %s6
  // Predicated region
  $region2: #{chain_forward.1} parent=0 // pred_check
    _
  $region3: #{chain_forward.1} parent=0 // pred_check_branch
    %11 = sbr.rel (0) target = $region5
  $region4: #{chain_forward.1} parent=0 // pred_region
    _
  $region5: #{chain_forward.1} parent=0 // pred_fallthru
    _
  // Predicated region
  $region6: #{chain_forward.1} parent=0 // pred_check
    _
  $region7: #{chain_forward.1} parent=0 // pred_check_branch
    %13 = sbr.rel (0) target = $region9
  $region8: #{chain_forward.1} parent=0 // pred_region
    _
  $region9: #{chain_forward.1} parent=0 // pred_fallthru
    _
  // Predicated region
  $region10: #{chain_forward.1} parent=0 // pred_check
    _
  $region11: #{chain_forward.1} parent=0 // pred_check_branch
    %15 = sbr.rel (0) target = $region13
  $region12: #{chain_forward.1} parent=0 // pred_region
    _
  $region13: #{chain_forward.1} parent=0 // pred_fallthru
    _
  // Predicated region
  $region14: #{chain_forward.1} parent=0 // pred_check
    _
  $region15: #{chain_forward.1} parent=0 // pred_check_branch
    %17 = sbr.rel (0) target = $region17
  $region16: #{chain_forward.1} parent=0 // pred_region
    _
  $region17: #{chain_forward.1} parent=0 // pred_fallthru
    _
  // Predicated region
  $region18: #{chain_forward.1} parent=0 // pred_check
    _
  $region19: #{chain_forward.1} parent=0 // pred_check_branch
    %19 = sbr.rel (0) target = $region21
  $region20: #{chain_forward.1} parent=0 // pred_region
    _
  $region21: #{chain_forward.1} parent=0 // pred_fallthru
    _
  %v20 = vld [vmem:[%s0] sm:$0x1f]
  %v21 = vld [vmem:[%s0 + $0x8] sm:$0x1f]
  %v22 = vld [vmem:[%s0 + $0x10] sm:$0x1f]
  %v23 = vld [vmem:[%s1] sm:$0xff]
  %v24 = vld [vmem:[%s1 + $0x8] sm:$0xff]
  %v25 = vld [vmem:[%s1 + $0x10] sm:$0xff]
  %v26 = vld [vmem:[%s1 + $0x18] sm:$0xff]
  %v27 = vld [vmem:[%s2] sm:$0xff]
  %v28 = vld [vmem:[%s2 + $0x8] sm:$0xff]
  %v29 = vld [vmem:[%s2 + $0x10] sm:$0xff]
  %v30 = vld [vmem:[%s2 + $0x18] sm:$0xff]
  %32 = vset.pattern.permute.xlu0 0
  %33 = vperm.xlu0 %32, %v27
  %v34 = vpop.permute.xlu0 %33
  %37 = vset.pattern.permute.xlu0 0
  %38 = vperm.xlu0 %37, %v28
  %v39 = vpop.permute.xlu0 %38
  %42 = vset.pattern.permute.xlu0 0
  %43 = vperm.xlu0 %42, %v29
  %v44 = vpop.permute.xlu0 %43
  %47 = vset.pattern.permute.xlu0 0
  %48 = vperm.xlu0 %47, %v30
  %v49 = vpop.permute.xlu0 %48
  %vm51 = vcmask 39936
  %v53 = vsel %vm51, %v23, 0
  %v56 = vsel %vm51, %v24, 0
  %v59 = vsel %vm51, %v25, 0
  %v62 = vsel %vm51, %v26, 0
  %vm64 = vcmask 1044480
  %v66 = vsel %vm64, %v20, 0
  %v69 = vsel %vm64, %v21, 0
  %v72 = vsel %vm64, %v22, 0
  %74 = vmatpush.msra.mxu0 0.0
  %75 = vmatpush.msra.mxu0 0.0
  %76 = vmatpush.msra.mxu0 0.0
  %77 = vmatpush.msra.mxu0 0.0
  %78 = vmatpush.msra.mxu0 0.0
  %79 = vmatpush.msra.mxu0 0.0
  %80 = vmatpush.msra.mxu0 0.0
  %81 = vmatpush.msra.mxu0 0.0
  %82 = vmatpush.msra.mxu0 0.0
  %83 = vmatpush.msra.mxu0 0.0
  %84 = vmatpush.msra.mxu0 0.0
  %85 = vmatpush.msra.mxu0 0.0
  %86 = vmatpush.msra.mxu0 0.0
  %87 = vmatpush.msra.mxu0 0.0
  %88 = vmatpush.msra.mxu0 0.0
  %v89 = vand.u32 %v66, 4294901760
  %90 = vmatpush.msra.mxu0 %v89
  %v91 = vand.u32 %v53, 4294901760
  %v92 = vsub.f32 %v53, %v91
  %v93 = vand.u32 %v92, 4294901760
  %v94 = vsub.f32 %v92, %v93
  %v95 = vand.u32 %v94, 4294901760
  %96 = vmatmul.f32.gmra.mxu0 %v95
  %v97 = vpop.f32.mrf.mxu0
  %v98 = vadd.f32 %v34, %v97
  %v99 = vand.u32 %v56, 4294901760
  %v100 = vsub.f32 %v56, %v99
  %v101 = vand.u32 %v100, 4294901760
  %v102 = vsub.f32 %v100, %v101
  %v103 = vand.u32 %v102, 4294901760
  %104 = vmatmul.f32.gmra.mxu0 %v103
  %v105 = vpop.f32.mrf.mxu0
  %v106 = vadd.f32 %v39, %v105
  %v107 = vand.u32 %v59, 4294901760
  %v108 = vsub.f32 %v59, %v107
  %v109 = vand.u32 %v108, 4294901760
  %v110 = vsub.f32 %v108, %v109
  %v111 = vand.u32 %v110, 4294901760
  %112 = vmatmul.f32.gmra.mxu0 %v111
  %v113 = vpop.f32.mrf.mxu0
  %v114 = vadd.f32 %v44, %v113
  %v115 = vand.u32 %v62, 4294901760
  %v116 = vsub.f32 %v62, %v115
  %v117 = vand.u32 %v116, 4294901760
  %v118 = vsub.f32 %v116, %v117
  %v119 = vand.u32 %v118, 4294901760
  %120 = vmatmul.f32.gmra.mxu0 %v119
  %v121 = vpop.f32.mrf.mxu0
  %v122 = vadd.f32 %v49, %v121
  %123 = vdwg.mxu0
  %124 = vmatpush.msra.mxu0 0.0
  %125 = vmatpush.msra.mxu0 0.0
  %126 = vmatpush.msra.mxu0 0.0
  %127 = vmatpush.msra.mxu0 0.0
  %128 = vmatpush.msra.mxu0 0.0
  %129 = vmatpush.msra.mxu0 0.0
  %130 = vmatpush.msra.mxu0 0.0
  %131 = vmatpush.msra.mxu0 0.0
  %132 = vmatpush.msra.mxu0 0.0
  %133 = vmatpush.msra.mxu0 0.0
  %134 = vmatpush.msra.mxu0 0.0
  %135 = vmatpush.msra.mxu0 0.0
  %136 = vmatpush.msra.mxu0 0.0
  %137 = vmatpush.msra.mxu0 0.0
  %138 = vmatpush.msra.mxu0 0.0
  %v139 = vand.u32 %v66, 4294901760
  %v140 = vsub.f32 %v66, %v139
  %v141 = vand.u32 %v140, 4294901760
  %v142 = vsub.f32 %v140, %v141
  %v143 = vand.u32 %v142, 4294901760
  %144 = vmatpush.msra.mxu0 %v143
  %v145 = vand.u32 %v53, 4294901760
  %146 = vmatmul.f32.gmra.mxu0 %v145
  %v147 = vpop.f32.mrf.mxu0
  %v148 = vadd.f32 %v98, %v147
  %v149 = vand.u32 %v56, 4294901760
  %150 = vmatmul.f32.gmra.mxu0 %v149
  %v151 = vpop.f32.mrf.mxu0
  %v152 = vadd.f32 %v106, %v151
  %v153 = vand.u32 %v59, 4294901760
  %154 = vmatmul.f32.gmra.mxu0 %v153
  %v155 = vpop.f32.mrf.mxu0
  %v156 = vadd.f32 %v114, %v155
  %v157 = vand.u32 %v62, 4294901760
  %158 = vmatmul.f32.gmra.mxu0 %v157
  %v159 = vpop.f32.mrf.mxu0
  %v160 = vadd.f32 %v122, %v159
  %161 = vdwg.mxu0
  %162 = vmatpush.msra.mxu0 0.0
  %163 = vmatpush.msra.mxu0 0.0
  %164 = vmatpush.msra.mxu0 0.0
  %165 = vmatpush.msra.mxu0 0.0
  %166 = vmatpush.msra.mxu0 0.0
  %167 = vmatpush.msra.mxu0 0.0
  %168 = vmatpush.msra.mxu0 0.0
  %169 = vmatpush.msra.mxu0 0.0
  %170 = vmatpush.msra.mxu0 0.0
  %171 = vmatpush.msra.mxu0 0.0
  %172 = vmatpush.msra.mxu0 0.0
  %173 = vmatpush.msra.mxu0 0.0
  %174 = vmatpush.msra.mxu0 0.0
  %175 = vmatpush.msra.mxu0 0.0
  %176 = vmatpush.msra.mxu0 0.0
  %v177 = vand.u32 %v66, 4294901760
  %v178 = vsub.f32 %v66, %v177
  %179 = vmatpush.msra.mxu0 %v178
  %v180 = vand.u32 %v53, 4294901760
  %v181 = vsub.f32 %v53, %v180
  %182 = vmatmul.f32.gmra.mxu0 %v181
  %v183 = vpop.f32.mrf.mxu0
  %v184 = vadd.f32 %v148, %v183
  %v185 = vand.u32 %v56, 4294901760
  %v186 = vsub.f32 %v56, %v185
  %187 = vmatmul.f32.gmra.mxu0 %v186
  %v188 = vpop.f32.mrf.mxu0
  %v189 = vadd.f32 %v152, %v188
  %v190 = vand.u32 %v59, 4294901760
  %v191 = vsub.f32 %v59, %v190
  %192 = vmatmul.f32.gmra.mxu0 %v191
  %v193 = vpop.f32.mrf.mxu0
  %v194 = vadd.f32 %v156, %v193
  %v195 = vand.u32 %v62, 4294901760
  %v196 = vsub.f32 %v62, %v195
  %197 = vmatmul.f32.gmra.mxu0 %v196
  %v198 = vpop.f32.mrf.mxu0
  %v199 = vadd.f32 %v160, %v198
  %200 = vdwg.mxu0
  %201 = vmatpush.msra.mxu0 0.0
  %202 = vmatpush.msra.mxu0 0.0
  %203 = vmatpush.msra.mxu0 0.0
  %204 = vmatpush.msra.mxu0 0.0
  %205 = vmatpush.msra.mxu0 0.0
  %206 = vmatpush.msra.mxu0 0.0
  %207 = vmatpush.msra.mxu0 0.0
  %208 = vmatpush.msra.mxu0 0.0
  %209 = vmatpush.msra.mxu0 0.0
  %210 = vmatpush.msra.mxu0 0.0
  %211 = vmatpush.msra.mxu0 0.0
  %212 = vmatpush.msra.mxu0 0.0
  %213 = vmatpush.msra.mxu0 0.0
  %214 = vmatpush.msra.mxu0 0.0
  %215 = vmatpush.msra.mxu0 0.0
  %v216 = vand.u32 %v66, 4294901760
  %217 = vmatpush.msra.mxu0 %v216
  %v218 = vand.u32 %v53, 4294901760
  %v219 = vsub.f32 %v53, %v218
  %v220 = vand.u32 %v219, 4294901760
  %221 = vmatmul.f32.gmra.mxu0 %v220
  %v222 = vpop.f32.mrf.mxu0
  %v223 = vadd.f32 %v184, %v222
  %v224 = vand.u32 %v56, 4294901760
  %v225 = vsub.f32 %v56, %v224
  %v226 = vand.u32 %v225, 4294901760
  %227 = vmatmul.f32.gmra.mxu0 %v226
  %v228 = vpop.f32.mrf.mxu0
  %v229 = vadd.f32 %v189, %v228
  %v230 = vand.u32 %v59, 4294901760
  %v231 = vsub.f32 %v59, %v230
  %v232 = vand.u32 %v231, 4294901760
  %233 = vmatmul.f32.gmra.mxu0 %v232
  %v234 = vpop.f32.mrf.mxu0
  %v235 = vadd.f32 %v194, %v234
  %v236 = vand.u32 %v62, 4294901760
  %v237 = vsub.f32 %v62, %v236
  %v238 = vand.u32 %v237, 4294901760
  %239 = vmatmul.f32.gmra.mxu0 %v238
  %v240 = vpop.f32.mrf.mxu0
  %v241 = vadd.f32 %v199, %v240
  %242 = vdwg.mxu0
  %243 = vmatpush.msra.mxu0 0.0
  %244 = vmatpush.msra.mxu0 0.0
  %245 = vmatpush.msra.mxu0 0.0
  %246 = vmatpush.msra.mxu0 0.0
  %247 = vmatpush.msra.mxu0 0.0
  %248 = vmatpush.msra.mxu0 0.0
  %249 = vmatpush.msra.mxu0 0.0
  %250 = vmatpush.msra.mxu0 0.0
  %251 = vmatpush.msra.mxu0 0.0
  %252 = vmatpush.msra.mxu0 0.0
  %253 = vmatpush.msra.mxu0 0.0
  %254 = vmatpush.msra.mxu0 0.0
  %255 = vmatpush.msra.mxu0 0.0
  %256 = vmatpush.msra.mxu0 0.0
  %257 = vmatpush.msra.mxu0 0.0
  %v258 = vand.u32 %v66, 4294901760
  %v259 = vsub.f32 %v66, %v258
  %v260 = vand.u32 %v259, 4294901760
  %261 = vmatpush.msra.mxu0 %v260
  %v262 = vand.u32 %v53, 4294901760
  %263 = vmatmul.f32.gmra.mxu0 %v262
  %v264 = vpop.f32.mrf.mxu0
  %v265 = vadd.f32 %v223, %v264
  %v266 = vand.u32 %v56, 4294901760
  %267 = vmatmul.f32.gmra.mxu0 %v266
  %v268 = vpop.f32.mrf.mxu0
  %v269 = vadd.f32 %v229, %v268
  %v270 = vand.u32 %v59, 4294901760
  %271 = vmatmul.f32.gmra.mxu0 %v270
  %v272 = vpop.f32.mrf.mxu0
  %v273 = vadd.f32 %v235, %v272
  %v274 = vand.u32 %v62, 4294901760
  %275 = vmatmul.f32.gmra.mxu0 %v274
  %v276 = vpop.f32.mrf.mxu0
  %v277 = vadd.f32 %v241, %v276
  %278 = vdwg.mxu0
  %279 = vmatpush.msra.mxu0 0.0
  %280 = vmatpush.msra.mxu0 0.0
  %281 = vmatpush.msra.mxu0 0.0
  %282 = vmatpush.msra.mxu0 0.0
  %283 = vmatpush.msra.mxu0 0.0
  %284 = vmatpush.msra.mxu0 0.0
  %285 = vmatpush.msra.mxu0 0.0
  %286 = vmatpush.msra.mxu0 0.0
  %287 = vmatpush.msra.mxu0 0.0
  %288 = vmatpush.msra.mxu0 0.0
  %289 = vmatpush.msra.mxu0 0.0
  %290 = vmatpush.msra.mxu0 0.0
  %291 = vmatpush.msra.mxu0 0.0
  %292 = vmatpush.msra.mxu0 0.0
  %293 = vmatpush.msra.mxu0 0.0
  %v294 = vand.u32 %v66, 4294901760
  %295 = vmatpush.msra.mxu0 %v294
  %v296 = vand.u32 %v53, 4294901760
  %297 = vmatmul.f32.gmra.mxu0 %v296
  %v298 = vpop.f32.mrf.mxu0
  %v299 = vadd.f32 %v265, %v298
  %v300 = vand.u32 %v56, 4294901760
  %301 = vmatmul.f32.gmra.mxu0 %v300
  %v302 = vpop.f32.mrf.mxu0
  %v303 = vadd.f32 %v269, %v302
  %v304 = vand.u32 %v59, 4294901760
  %305 = vmatmul.f32.gmra.mxu0 %v304
  %v306 = vpop.f32.mrf.mxu0
  %v307 = vadd.f32 %v273, %v306
  %v308 = vand.u32 %v62, 4294901760
  %309 = vmatmul.f32.gmra.mxu0 %v308
  %v310 = vpop.f32.mrf.mxu0
  %v311 = vadd.f32 %v277, %v310
  %312 = vdwg.mxu0
  %313 = vmatpush.msra.mxu0 0.0
  %314 = vmatpush.msra.mxu0 0.0
  %315 = vmatpush.msra.mxu0 0.0
  %316 = vmatpush.msra.mxu0 0.0
  %317 = vmatpush.msra.mxu0 0.0
  %318 = vmatpush.msra.mxu0 0.0
  %319 = vmatpush.msra.mxu0 0.0
  %320 = vmatpush.msra.mxu0 0.0
  %321 = vmatpush.msra.mxu0 0.0
  %322 = vmatpush.msra.mxu0 0.0
  %323 = vmatpush.msra.mxu0 0.0
  %324 = vmatpush.msra.mxu0 0.0
  %325 = vmatpush.msra.mxu0 0.0
  %326 = vmatpush.msra.mxu0 0.0
  %327 = vmatpush.msra.mxu0 0.0
  %v328 = vand.u32 %v69, 4294901760
  %329 = vmatpush.msra.mxu0 %v328
  %v330 = vand.u32 %v53, 4294901760
  %v331 = vsub.f32 %v53, %v330
  %v332 = vand.u32 %v331, 4294901760
  %v333 = vsub.f32 %v331, %v332
  %v334 = vand.u32 %v333, 4294901760
  %335 = vmatmul.f32.gmra.mxu0 %v334
  %v336 = vpop.f32.mrf.mxu0
  %v337 = vadd.f32 %v34, %v336
  %v338 = vand.u32 %v56, 4294901760
  %v339 = vsub.f32 %v56, %v338
  %v340 = vand.u32 %v339, 4294901760
  %v341 = vsub.f32 %v339, %v340
  %v342 = vand.u32 %v341, 4294901760
  %343 = vmatmul.f32.gmra.mxu0 %v342
  %v344 = vpop.f32.mrf.mxu0
  %v345 = vadd.f32 %v39, %v344
  %v346 = vand.u32 %v59, 4294901760
  %v347 = vsub.f32 %v59, %v346
  %v348 = vand.u32 %v347, 4294901760
  %v349 = vsub.f32 %v347, %v348
  %v350 = vand.u32 %v349, 4294901760
  %351 = vmatmul.f32.gmra.mxu0 %v350
  %v352 = vpop.f32.mrf.mxu0
  %v353 = vadd.f32 %v44, %v352
  %v354 = vand.u32 %v62, 4294901760
  %v355 = vsub.f32 %v62, %v354
  %v356 = vand.u32 %v355, 4294901760
  %v357 = vsub.f32 %v355, %v356
  %v358 = vand.u32 %v357, 4294901760
  %359 = vmatmul.f32.gmra.mxu0 %v358
  %v360 = vpop.f32.mrf.mxu0
  %v361 = vadd.f32 %v49, %v360
  %362 = vdwg.mxu0
  %363 = vmatpush.msra.mxu0 0.0
  %364 = vmatpush.msra.mxu0 0.0
  %365 = vmatpush.msra.mxu0 0.0
  %366 = vmatpush.msra.mxu0 0.0
  %367 = vmatpush.msra.mxu0 0.0
  %368 = vmatpush.msra.mxu0 0.0
  %369 = vmatpush.msra.mxu0 0.0
  %370 = vmatpush.msra.mxu0 0.0
  %371 = vmatpush.msra.mxu0 0.0
  %372 = vmatpush.msra.mxu0 0.0
  %373 = vmatpush.msra.mxu0 0.0
  %374 = vmatpush.msra.mxu0 0.0
  %375 = vmatpush.msra.mxu0 0.0
  %376 = vmatpush.msra.mxu0 0.0
  %377 = vmatpush.msra.mxu0 0.0
  %v378 = vand.u32 %v69, 4294901760
  %v379 = vsub.f32 %v69, %v378
  %v380 = vand.u32 %v379, 4294901760
  %v381 = vsub.f32 %v379, %v380
  %v382 = vand.u32 %v381, 4294901760
  %383 = vmatpush.msra.mxu0 %v382
  %v384 = vand.u32 %v53, 4294901760
  %385 = vmatmul.f32.gmra.mxu0 %v384
  %v386 = vpop.f32.mrf.mxu0
  %v387 = vadd.f32 %v337, %v386
  %v388 = vand.u32 %v56, 4294901760
  %389 = vmatmul.f32.gmra.mxu0 %v388
  %v390 = vpop.f32.mrf.mxu0
  %v391 = vadd.f32 %v345, %v390
  %v392 = vand.u32 %v59, 4294901760
  %393 = vmatmul.f32.gmra.mxu0 %v392
  %v394 = vpop.f32.mrf.mxu0
  %v395 = vadd.f32 %v353, %v394
  %v396 = vand.u32 %v62, 4294901760
  %397 = vmatmul.f32.gmra.mxu0 %v396
  %v398 = vpop.f32.mrf.mxu0
  %v399 = vadd.f32 %v361, %v398
  %400 = vdwg.mxu0
  %401 = vmatpush.msra.mxu0 0.0
  %402 = vmatpush.msra.mxu0 0.0
  %403 = vmatpush.msra.mxu0 0.0
  %404 = vmatpush.msra.mxu0 0.0
  %405 = vmatpush.msra.mxu0 0.0
  %406 = vmatpush.msra.mxu0 0.0
  %407 = vmatpush.msra.mxu0 0.0
  %408 = vmatpush.msra.mxu0 0.0
  %409 = vmatpush.msra.mxu0 0.0
  %410 = vmatpush.msra.mxu0 0.0
  %411 = vmatpush.msra.mxu0 0.0
  %412 = vmatpush.msra.mxu0 0.0
  %413 = vmatpush.msra.mxu0 0.0
  %414 = vmatpush.msra.mxu0 0.0
  %415 = vmatpush.msra.mxu0 0.0
  %v416 = vand.u32 %v69, 4294901760
  %v417 = vsub.f32 %v69, %v416
  %418 = vmatpush.msra.mxu0 %v417
  %v419 = vand.u32 %v53, 4294901760
  %v420 = vsub.f32 %v53, %v419
  %421 = vmatmul.f32.gmra.mxu0 %v420
  %v422 = vpop.f32.mrf.mxu0
  %v423 = vadd.f32 %v387, %v422
  %v424 = vand.u32 %v56, 4294901760
  %v425 = vsub.f32 %v56, %v424
  %426 = vmatmul.f32.gmra.mxu0 %v425
  %v427 = vpop.f32.mrf.mxu0
  %v428 = vadd.f32 %v391, %v427
  %v429 = vand.u32 %v59, 4294901760
  %v430 = vsub.f32 %v59, %v429
  %431 = vmatmul.f32.gmra.mxu0 %v430
  %v432 = vpop.f32.mrf.mxu0
  %v433 = vadd.f32 %v395, %v432
  %v434 = vand.u32 %v62, 4294901760
  %v435 = vsub.f32 %v62, %v434
  %436 = vmatmul.f32.gmra.mxu0 %v435
  %v437 = vpop.f32.mrf.mxu0
  %v438 = vadd.f32 %v399, %v437
  %439 = vdwg.mxu0
  %440 = vmatpush.msra.mxu0 0.0
  %441 = vmatpush.msra.mxu0 0.0
  %442 = vmatpush.msra.mxu0 0.0
  %443 = vmatpush.msra.mxu0 0.0
  %444 = vmatpush.msra.mxu0 0.0
  %445 = vmatpush.msra.mxu0 0.0
  %446 = vmatpush.msra.mxu0 0.0
  %447 = vmatpush.msra.mxu0 0.0
  %448 = vmatpush.msra.mxu0 0.0
  %449 = vmatpush.msra.mxu0 0.0
  %450 = vmatpush.msra.mxu0 0.0
  %451 = vmatpush.msra.mxu0 0.0
  %452 = vmatpush.msra.mxu0 0.0
  %453 = vmatpush.msra.mxu0 0.0
  %454 = vmatpush.msra.mxu0 0.0
  %v455 = vand.u32 %v69, 4294901760
  %456 = vmatpush.msra.mxu0 %v455
  %v457 = vand.u32 %v53, 4294901760
  %v458 = vsub.f32 %v53, %v457
  %v459 = vand.u32 %v458, 4294901760
  %460 = vmatmul.f32.gmra.mxu0 %v459
  %v461 = vpop.f32.mrf.mxu0
  %v462 = vadd.f32 %v423, %v461
  %v463 = vand.u32 %v56, 4294901760
  %v464 = vsub.f32 %v56, %v463
  %v465 = vand.u32 %v464, 4294901760
  %466 = vmatmul.f32.gmra.mxu0 %v465
  %v467 = vpop.f32.mrf.mxu0
  %v468 = vadd.f32 %v428, %v467
  %v469 = vand.u32 %v59, 4294901760
  %v470 = vsub.f32 %v59, %v469
  %v471 = vand.u32 %v470, 4294901760
  %472 = vmatmul.f32.gmra.mxu0 %v471
  %v473 = vpop.f32.mrf.mxu0
  %v474 = vadd.f32 %v433, %v473
  %v475 = vand.u32 %v62, 4294901760
  %v476 = vsub.f32 %v62, %v475
  %v477 = vand.u32 %v476, 4294901760
  %478 = vmatmul.f32.gmra.mxu0 %v477
  %v479 = vpop.f32.mrf.mxu0
  %v480 = vadd.f32 %v438, %v479
  %481 = vdwg.mxu0
  %482 = vmatpush.msra.mxu0 0.0
  %483 = vmatpush.msra.mxu0 0.0
  %484 = vmatpush.msra.mxu0 0.0
  %485 = vmatpush.msra.mxu0 0.0
  %486 = vmatpush.msra.mxu0 0.0
  %487 = vmatpush.msra.mxu0 0.0
  %488 = vmatpush.msra.mxu0 0.0
  %489 = vmatpush.msra.mxu0 0.0
  %490 = vmatpush.msra.mxu0 0.0
  %491 = vmatpush.msra.mxu0 0.0
  %492 = vmatpush.msra.mxu0 0.0
  %493 = vmatpush.msra.mxu0 0.0
  %494 = vmatpush.msra.mxu0 0.0
  %495 = vmatpush.msra.mxu0 0.0
  %496 = vmatpush.msra.mxu0 0.0
  %v497 = vand.u32 %v69, 4294901760
  %v498 = vsub.f32 %v69, %v497
  %v499 = vand.u32 %v498, 4294901760
  %500 = vmatpush.msra.mxu0 %v499
  %v501 = vand.u32 %v53, 4294901760
  %502 = vmatmul.f32.gmra.mxu0 %v501
  %v503 = vpop.f32.mrf.mxu0
  %v504 = vadd.f32 %v462, %v503
  %v505 = vand.u32 %v56, 4294901760
  %506 = vmatmul.f32.gmra.mxu0 %v505
  %v507 = vpop.f32.mrf.mxu0
  %v508 = vadd.f32 %v468, %v507
  %v509 = vand.u32 %v59, 4294901760
  %510 = vmatmul.f32.gmra.mxu0 %v509
  %v511 = vpop.f32.mrf.mxu0
  %v512 = vadd.f32 %v474, %v511
  %v513 = vand.u32 %v62, 4294901760
  %514 = vmatmul.f32.gmra.mxu0 %v513
  %v515 = vpop.f32.mrf.mxu0
  %v516 = vadd.f32 %v480, %v515
  %517 = vdwg.mxu0
  %518 = vmatpush.msra.mxu0 0.0
  %519 = vmatpush.msra.mxu0 0.0
  %520 = vmatpush.msra.mxu0 0.0
  %521 = vmatpush.msra.mxu0 0.0
  %522 = vmatpush.msra.mxu0 0.0
  %523 = vmatpush.msra.mxu0 0.0
  %524 = vmatpush.msra.mxu0 0.0
  %525 = vmatpush.msra.mxu0 0.0
  %526 = vmatpush.msra.mxu0 0.0
  %527 = vmatpush.msra.mxu0 0.0
  %528 = vmatpush.msra.mxu0 0.0
  %529 = vmatpush.msra.mxu0 0.0
  %530 = vmatpush.msra.mxu0 0.0
  %531 = vmatpush.msra.mxu0 0.0
  %532 = vmatpush.msra.mxu0 0.0
  %v533 = vand.u32 %v69, 4294901760
  %534 = vmatpush.msra.mxu0 %v533
  %v535 = vand.u32 %v53, 4294901760
  %536 = vmatmul.f32.gmra.mxu0 %v535
  %v537 = vpop.f32.mrf.mxu0
  %v538 = vadd.f32 %v504, %v537
  %v539 = vand.u32 %v56, 4294901760
  %540 = vmatmul.f32.gmra.mxu0 %v539
  %v541 = vpop.f32.mrf.mxu0
  %v542 = vadd.f32 %v508, %v541
  %v543 = vand.u32 %v59, 4294901760
  %544 = vmatmul.f32.gmra.mxu0 %v543
  %v545 = vpop.f32.mrf.mxu0
  %v546 = vadd.f32 %v512, %v545
  %v547 = vand.u32 %v62, 4294901760
  %548 = vmatmul.f32.gmra.mxu0 %v547
  %v549 = vpop.f32.mrf.mxu0
  %v550 = vadd.f32 %v516, %v549
  %551 = vdwg.mxu0
  %552 = vmatpush.msra.mxu0 0.0
  %553 = vmatpush.msra.mxu0 0.0
  %554 = vmatpush.msra.mxu0 0.0
  %555 = vmatpush.msra.mxu0 0.0
  %556 = vmatpush.msra.mxu0 0.0
  %557 = vmatpush.msra.mxu0 0.0
  %558 = vmatpush.msra.mxu0 0.0
  %559 = vmatpush.msra.mxu0 0.0
  %560 = vmatpush.msra.mxu0 0.0
  %561 = vmatpush.msra.mxu0 0.0
  %562 = vmatpush.msra.mxu0 0.0
  %563 = vmatpush.msra.mxu0 0.0
  %564 = vmatpush.msra.mxu0 0.0
  %565 = vmatpush.msra.mxu0 0.0
  %566 = vmatpush.msra.mxu0 0.0
  %v567 = vand.u32 %v72, 4294901760
  %568 = vmatpush.msra.mxu0 %v567
  %v569 = vand.u32 %v53, 4294901760
  %v570 = vsub.f32 %v53, %v569
  %v571 = vand.u32 %v570, 4294901760
  %v572 = vsub.f32 %v570, %v571
  %v573 = vand.u32 %v572, 4294901760
  %574 = vmatmul.f32.gmra.mxu0 %v573
  %v575 = vpop.f32.mrf.mxu0
  %v576 = vadd.f32 %v34, %v575
  %v577 = vand.u32 %v56, 4294901760
  %v578 = vsub.f32 %v56, %v577
  %v579 = vand.u32 %v578, 4294901760
  %v580 = vsub.f32 %v578, %v579
  %v581 = vand.u32 %v580, 4294901760
  %582 = vmatmul.f32.gmra.mxu0 %v581
  %v583 = vpop.f32.mrf.mxu0
  %v584 = vadd.f32 %v39, %v583
  %v585 = vand.u32 %v59, 4294901760
  %v586 = vsub.f32 %v59, %v585
  %v587 = vand.u32 %v586, 4294901760
  %v588 = vsub.f32 %v586, %v587
  %v589 = vand.u32 %v588, 4294901760
  %590 = vmatmul.f32.gmra.mxu0 %v589
  %v591 = vpop.f32.mrf.mxu0
  %v592 = vadd.f32 %v44, %v591
  %v593 = vand.u32 %v62, 4294901760
  %v594 = vsub.f32 %v62, %v593
  %v595 = vand.u32 %v594, 4294901760
  %v596 = vsub.f32 %v594, %v595
  %v597 = vand.u32 %v596, 4294901760
  %598 = vmatmul.f32.gmra.mxu0 %v597
  %v599 = vpop.f32.mrf.mxu0
  %v600 = vadd.f32 %v49, %v599
  %601 = vdwg.mxu0
  %602 = vmatpush.msra.mxu0 0.0
  %603 = vmatpush.msra.mxu0 0.0
  %604 = vmatpush.msra.mxu0 0.0
  %605 = vmatpush.msra.mxu0 0.0
  %606 = vmatpush.msra.mxu0 0.0
  %607 = vmatpush.msra.mxu0 0.0
  %608 = vmatpush.msra.mxu0 0.0
  %609 = vmatpush.msra.mxu0 0.0
  %610 = vmatpush.msra.mxu0 0.0
  %611 = vmatpush.msra.mxu0 0.0
  %612 = vmatpush.msra.mxu0 0.0
  %613 = vmatpush.msra.mxu0 0.0
  %614 = vmatpush.msra.mxu0 0.0
  %615 = vmatpush.msra.mxu0 0.0
  %616 = vmatpush.msra.mxu0 0.0
  %v617 = vand.u32 %v72, 4294901760
  %v618 = vsub.f32 %v72, %v617
  %v619 = vand.u32 %v618, 4294901760
  %v620 = vsub.f32 %v618, %v619
  %v621 = vand.u32 %v620, 4294901760
  %622 = vmatpush.msra.mxu0 %v621
  %v623 = vand.u32 %v53, 4294901760
  %624 = vmatmul.f32.gmra.mxu0 %v623
  %v625 = vpop.f32.mrf.mxu0
  %v626 = vadd.f32 %v576, %v625
  %v627 = vand.u32 %v56, 4294901760
  %628 = vmatmul.f32.gmra.mxu0 %v627
  %v629 = vpop.f32.mrf.mxu0
  %v630 = vadd.f32 %v584, %v629
  %v631 = vand.u32 %v59, 4294901760
  %632 = vmatmul.f32.gmra.mxu0 %v631
  %v633 = vpop.f32.mrf.mxu0
  %v634 = vadd.f32 %v592, %v633
  %v635 = vand.u32 %v62, 4294901760
  %636 = vmatmul.f32.gmra.mxu0 %v635
  %v637 = vpop.f32.mrf.mxu0
  %v638 = vadd.f32 %v600, %v637
  %639 = vdwg.mxu0
  %640 = vmatpush.msra.mxu0 0.0
  %641 = vmatpush.msra.mxu0 0.0
  %642 = vmatpush.msra.mxu0 0.0
  %643 = vmatpush.msra.mxu0 0.0
  %644 = vmatpush.msra.mxu0 0.0
  %645 = vmatpush.msra.mxu0 0.0
  %646 = vmatpush.msra.mxu0 0.0
  %647 = vmatpush.msra.mxu0 0.0
  %648 = vmatpush.msra.mxu0 0.0
  %649 = vmatpush.msra.mxu0 0.0
  %650 = vmatpush.msra.mxu0 0.0
  %651 = vmatpush.msra.mxu0 0.0
  %652 = vmatpush.msra.mxu0 0.0
  %653 = vmatpush.msra.mxu0 0.0
  %654 = vmatpush.msra.mxu0 0.0
  %v655 = vand.u32 %v72, 4294901760
  %v656 = vsub.f32 %v72, %v655
  %657 = vmatpush.msra.mxu0 %v656
  %v658 = vand.u32 %v53, 4294901760
  %v659 = vsub.f32 %v53, %v658
  %660 = vmatmul.f32.gmra.mxu0 %v659
  %v661 = vpop.f32.mrf.mxu0
  %v662 = vadd.f32 %v626, %v661
  %v663 = vand.u32 %v56, 4294901760
  %v664 = vsub.f32 %v56, %v663
  %665 = vmatmul.f32.gmra.mxu0 %v664
  %v666 = vpop.f32.mrf.mxu0
  %v667 = vadd.f32 %v630, %v666
  %v668 = vand.u32 %v59, 4294901760
  %v669 = vsub.f32 %v59, %v668
  %670 = vmatmul.f32.gmra.mxu0 %v669
  %v671 = vpop.f32.mrf.mxu0
  %v672 = vadd.f32 %v634, %v671
  %v673 = vand.u32 %v62, 4294901760
  %v674 = vsub.f32 %v62, %v673
  %675 = vmatmul.f32.gmra.mxu0 %v674
  %v676 = vpop.f32.mrf.mxu0
  %v677 = vadd.f32 %v638, %v676
  %678 = vdwg.mxu0
  %679 = vmatpush.msra.mxu0 0.0
  %680 = vmatpush.msra.mxu0 0.0
  %681 = vmatpush.msra.mxu0 0.0
  %682 = vmatpush.msra.mxu0 0.0
  %683 = vmatpush.msra.mxu0 0.0
  %684 = vmatpush.msra.mxu0 0.0
  %685 = vmatpush.msra.mxu0 0.0
  %686 = vmatpush.msra.mxu0 0.0
  %687 = vmatpush.msra.mxu0 0.0
  %688 = vmatpush.msra.mxu0 0.0
  %689 = vmatpush.msra.mxu0 0.0
  %690 = vmatpush.msra.mxu0 0.0
  %691 = vmatpush.msra.mxu0 0.0
  %692 = vmatpush.msra.mxu0 0.0
  %693 = vmatpush.msra.mxu0 0.0
  %v694 = vand.u32 %v72, 4294901760
  %695 = vmatpush.msra.mxu0 %v694
  %v696 = vand.u32 %v53, 4294901760
  %v697 = vsub.f32 %v53, %v696
  %v698 = vand.u32 %v697, 4294901760
  %699 = vmatmul.f32.gmra.mxu0 %v698
  %v700 = vpop.f32.mrf.mxu0
  %v701 = vadd.f32 %v662, %v700
  %v702 = vand.u32 %v56, 4294901760
  %v703 = vsub.f32 %v56, %v702
  %v704 = vand.u32 %v703, 4294901760
  %705 = vmatmul.f32.gmra.mxu0 %v704
  %v706 = vpop.f32.mrf.mxu0
  %v707 = vadd.f32 %v667, %v706
  %v708 = vand.u32 %v59, 4294901760
  %v709 = vsub.f32 %v59, %v708
  %v710 = vand.u32 %v709, 4294901760
  %711 = vmatmul.f32.gmra.mxu0 %v710
  %v712 = vpop.f32.mrf.mxu0
  %v713 = vadd.f32 %v672, %v712
  %v714 = vand.u32 %v62, 4294901760
  %v715 = vsub.f32 %v62, %v714
  %v716 = vand.u32 %v715, 4294901760
  %717 = vmatmul.f32.gmra.mxu0 %v716
  %v718 = vpop.f32.mrf.mxu0
  %v719 = vadd.f32 %v677, %v718
  %720 = vdwg.mxu0
  %721 = vmatpush.msra.mxu0 0.0
  %722 = vmatpush.msra.mxu0 0.0
  %723 = vmatpush.msra.mxu0 0.0
  %724 = vmatpush.msra.mxu0 0.0
  %725 = vmatpush.msra.mxu0 0.0
  %726 = vmatpush.msra.mxu0 0.0
  %727 = vmatpush.msra.mxu0 0.0
  %728 = vmatpush.msra.mxu0 0.0
  %729 = vmatpush.msra.mxu0 0.0
  %730 = vmatpush.msra.mxu0 0.0
  %731 = vmatpush.msra.mxu0 0.0
  %732 = vmatpush.msra.mxu0 0.0
  %733 = vmatpush.msra.mxu0 0.0
  %734 = vmatpush.msra.mxu0 0.0
  %735 = vmatpush.msra.mxu0 0.0
  %v736 = vand.u32 %v72, 4294901760
  %v737 = vsub.f32 %v72, %v736
  %v738 = vand.u32 %v737, 4294901760
  %739 = vmatpush.msra.mxu0 %v738
  %v740 = vand.u32 %v53, 4294901760
  %741 = vmatmul.f32.gmra.mxu0 %v740
  %v742 = vpop.f32.mrf.mxu0
  %v743 = vadd.f32 %v701, %v742
  %v744 = vand.u32 %v56, 4294901760
  %745 = vmatmul.f32.gmra.mxu0 %v744
  %v746 = vpop.f32.mrf.mxu0
  %v747 = vadd.f32 %v707, %v746
  %v748 = vand.u32 %v59, 4294901760
  %749 = vmatmul.f32.gmra.mxu0 %v748
  %v750 = vpop.f32.mrf.mxu0
  %v751 = vadd.f32 %v713, %v750
  %v752 = vand.u32 %v62, 4294901760
  %753 = vmatmul.f32.gmra.mxu0 %v752
  %v754 = vpop.f32.mrf.mxu0
  %v755 = vadd.f32 %v719, %v754
  %756 = vdwg.mxu0
  %757 = vmatpush.msra.mxu0 0.0
  %758 = vmatpush.msra.mxu0 0.0
  %759 = vmatpush.msra.mxu0 0.0
  %760 = vmatpush.msra.mxu0 0.0
  %761 = vmatpush.msra.mxu0 0.0
  %762 = vmatpush.msra.mxu0 0.0
  %763 = vmatpush.msra.mxu0 0.0
  %764 = vmatpush.msra.mxu0 0.0
  %765 = vmatpush.msra.mxu0 0.0
  %766 = vmatpush.msra.mxu0 0.0
  %767 = vmatpush.msra.mxu0 0.0
  %768 = vmatpush.msra.mxu0 0.0
  %769 = vmatpush.msra.mxu0 0.0
  %770 = vmatpush.msra.mxu0 0.0
  %771 = vmatpush.msra.mxu0 0.0
  %v772 = vand.u32 %v72, 4294901760
  %773 = vmatpush.msra.mxu0 %v772
  %v774 = vand.u32 %v53, 4294901760
  %775 = vmatmul.f32.gmra.mxu0 %v774
  %v776 = vpop.f32.mrf.mxu0
  %v777 = vadd.f32 %v743, %v776
  %v778 = vand.u32 %v56, 4294901760
  %779 = vmatmul.f32.gmra.mxu0 %v778
  %v780 = vpop.f32.mrf.mxu0
  %v781 = vadd.f32 %v747, %v780
  %v782 = vand.u32 %v59, 4294901760
  %783 = vmatmul.f32.gmra.mxu0 %v782
  %v784 = vpop.f32.mrf.mxu0
  %v785 = vadd.f32 %v751, %v784
  %v786 = vand.u32 %v62, 4294901760
  %787 = vmatmul.f32.gmra.mxu0 %v786
  %v788 = vpop.f32.mrf.mxu0
  %v789 = vadd.f32 %v755, %v788
  %790 = vdwg.mxu0
  %v791 = vmax.f32 %v299, 0.0
  %v792 = vmax.f32 %v538, 0.0
  %v793 = vmax.f32 %v777, 0.0
  %v794 = vmax.f32 %v303, 0.0
  %v795 = vmax.f32 %v542, 0.0
  %v796 = vmax.f32 %v781, 0.0
  %v797 = vmax.f32 %v307, 0.0
  %v798 = vmax.f32 %v546, 0.0
  %v799 = vmax.f32 %v785, 0.0
  %v800 = vmax.f32 %v311, 0.0
  %v801 = vmax.f32 %v550, 0.0
  %v802 = vmax.f32 %v789, 0.0
  %v803 = vld [vmem:[%s3] sm:$0x1f]
  %v804 = vld [vmem:[%s4] sm:$0x1f]
  %806 = vset.pattern.permute.xlu0 0
  %807 = vperm.xlu0 %806, %v804
  %v808 = vpop.permute.xlu0 %807
  %vm810 = vcmask 261120
  %v812 = vsel %vm810, %v803, 0
  %814 = vmatpush.msra.mxu0 0.0
  %815 = vmatpush.msra.mxu0 0.0
  %816 = vmatpush.msra.mxu0 0.0
  %817 = vmatpush.msra.mxu0 0.0
  %818 = vmatpush.msra.mxu0 0.0
  %819 = vmatpush.msra.mxu0 0.0
  %820 = vmatpush.msra.mxu0 0.0
  %821 = vmatpush.msra.mxu0 0.0
  %822 = vmatpush.msra.mxu0 0.0
  %823 = vmatpush.msra.mxu0 0.0
  %824 = vmatpush.msra.mxu0 0.0
  %825 = vmatpush.msra.mxu0 0.0
  %v826 = vand.u32 %v800, 4294901760
  %827 = vmatpush.msra.mxu0 %v826
  %v828 = vand.u32 %v797, 4294901760
  %829 = vmatpush.msra.mxu0 %v828
  %v830 = vand.u32 %v794, 4294901760
  %831 = vmatpush.msra.mxu0 %v830
  %v832 = vand.u32 %v791, 4294901760
  %833 = vmatpush.msra.mxu0 %v832
  %v834 = vand.u32 %v812, 4294901760
  %v835 = vsub.f32 %v812, %v834
  %v836 = vand.u32 %v835, 4294901760
  %v837 = vsub.f32 %v835, %v836
  %v838 = vand.u32 %v837, 4294901760
  %839 = vmatmul.f32.gmra.mxu0 %v838
  %v840 = vpop.f32.mrf.mxu0
  %v841 = vadd.f32 %v808, %v840
  %842 = vdwg.mxu0
  %843 = vmatpush.msra.mxu0 0.0
  %844 = vmatpush.msra.mxu0 0.0
  %845 = vmatpush.msra.mxu0 0.0
  %846 = vmatpush.msra.mxu0 0.0
  %847 = vmatpush.msra.mxu0 0.0
  %848 = vmatpush.msra.mxu0 0.0
  %849 = vmatpush.msra.mxu0 0.0
  %850 = vmatpush.msra.mxu0 0.0
  %851 = vmatpush.msra.mxu0 0.0
  %852 = vmatpush.msra.mxu0 0.0
  %853 = vmatpush.msra.mxu0 0.0
  %854 = vmatpush.msra.mxu0 0.0
  %v855 = vand.u32 %v800, 4294901760
  %v856 = vsub.f32 %v800, %v855
  %v857 = vand.u32 %v856, 4294901760
  %v858 = vsub.f32 %v856, %v857
  %v859 = vand.u32 %v858, 4294901760
  %860 = vmatpush.msra.mxu0 %v859
  %v861 = vand.u32 %v797, 4294901760
  %v862 = vsub.f32 %v797, %v861
  %v863 = vand.u32 %v862, 4294901760
  %v864 = vsub.f32 %v862, %v863
  %v865 = vand.u32 %v864, 4294901760
  %866 = vmatpush.msra.mxu0 %v865
  %v867 = vand.u32 %v794, 4294901760
  %v868 = vsub.f32 %v794, %v867
  %v869 = vand.u32 %v868, 4294901760
  %v870 = vsub.f32 %v868, %v869
  %v871 = vand.u32 %v870, 4294901760
  %872 = vmatpush.msra.mxu0 %v871
  %v873 = vand.u32 %v791, 4294901760
  %v874 = vsub.f32 %v791, %v873
  %v875 = vand.u32 %v874, 4294901760
  %v876 = vsub.f32 %v874, %v875
  %v877 = vand.u32 %v876, 4294901760
  %878 = vmatpush.msra.mxu0 %v877
  %v879 = vand.u32 %v812, 4294901760
  %880 = vmatmul.f32.gmra.mxu0 %v879
  %v881 = vpop.f32.mrf.mxu0
  %v882 = vadd.f32 %v841, %v881
  %883 = vdwg.mxu0
  %884 = vmatpush.msra.mxu0 0.0
  %885 = vmatpush.msra.mxu0 0.0
  %886 = vmatpush.msra.mxu0 0.0
  %887 = vmatpush.msra.mxu0 0.0
  %888 = vmatpush.msra.mxu0 0.0
  %889 = vmatpush.msra.mxu0 0.0
  %890 = vmatpush.msra.mxu0 0.0
  %891 = vmatpush.msra.mxu0 0.0
  %892 = vmatpush.msra.mxu0 0.0
  %893 = vmatpush.msra.mxu0 0.0
  %894 = vmatpush.msra.mxu0 0.0
  %895 = vmatpush.msra.mxu0 0.0
  %v896 = vand.u32 %v800, 4294901760
  %v897 = vsub.f32 %v800, %v896
  %898 = vmatpush.msra.mxu0 %v897
  %v899 = vand.u32 %v797, 4294901760
  %v900 = vsub.f32 %v797, %v899
  %901 = vmatpush.msra.mxu0 %v900
  %v902 = vand.u32 %v794, 4294901760
  %v903 = vsub.f32 %v794, %v902
  %904 = vmatpush.msra.mxu0 %v903
  %v905 = vand.u32 %v791, 4294901760
  %v906 = vsub.f32 %v791, %v905
  %907 = vmatpush.msra.mxu0 %v906
  %v908 = vand.u32 %v812, 4294901760
  %v909 = vsub.f32 %v812, %v908
  %910 = vmatmul.f32.gmra.mxu0 %v909
  %v911 = vpop.f32.mrf.mxu0
  %v912 = vadd.f32 %v882, %v911
  %913 = vdwg.mxu0
  %914 = vmatpush.msra.mxu0 0.0
  %915 = vmatpush.msra.mxu0 0.0
  %916 = vmatpush.msra.mxu0 0.0
  %917 = vmatpush.msra.mxu0 0.0
  %918 = vmatpush.msra.mxu0 0.0
  %919 = vmatpush.msra.mxu0 0.0
  %920 = vmatpush.msra.mxu0 0.0
  %921 = vmatpush.msra.mxu0 0.0
  %922 = vmatpush.msra.mxu0 0.0
  %923 = vmatpush.msra.mxu0 0.0
  %924 = vmatpush.msra.mxu0 0.0
  %925 = vmatpush.msra.mxu0 0.0
  %v926 = vand.u32 %v800, 4294901760
  %927 = vmatpush.msra.mxu0 %v926
  %v928 = vand.u32 %v797, 4294901760
  %929 = vmatpush.msra.mxu0 %v928
  %v930 = vand.u32 %v794, 4294901760
  %931 = vmatpush.msra.mxu0 %v930
  %v932 = vand.u32 %v791, 4294901760
  %933 = vmatpush.msra.mxu0 %v932
  %v934 = vand.u32 %v812, 4294901760
  %v935 = vsub.f32 %v812, %v934
  %v936 = vand.u32 %v935, 4294901760
  %937 = vmatmul.f32.gmra.mxu0 %v936
  %v938 = vpop.f32.mrf.mxu0
  %v939 = vadd.f32 %v912, %v938
  %940 = vdwg.mxu0
  %941 = vmatpush.msra.mxu0 0.0
  %942 = vmatpush.msra.mxu0 0.0
  %943 = vmatpush.msra.mxu0 0.0
  %944 = vmatpush.msra.mxu0 0.0
  %945 = vmatpush.msra.mxu0 0.0
  %946 = vmatpush.msra.mxu0 0.0
  %947 = vmatpush.msra.mxu0 0.0
  %948 = vmatpush.msra.mxu0 0.0
  %949 = vmatpush.msra.mxu0 0.0
  %950 = vmatpush.msra.mxu0 0.0
  %951 = vmatpush.msra.mxu0 0.0
  %952 = vmatpush.msra.mxu0 0.0
  %v953 = vand.u32 %v800, 4294901760
  %v954 = vsub.f32 %v800, %v953
  %v955 = vand.u32 %v954, 4294901760
  %956 = vmatpush.msra.mxu0 %v955
  %v957 = vand.u32 %v797, 4294901760
  %v958 = vsub.f32 %v797, %v957
  %v959 = vand.u32 %v958, 4294901760
  %960 = vmatpush.msra.mxu0 %v959
  %v961 = vand.u32 %v794, 4294901760
  %v962 = vsub.f32 %v794, %v961
  %v963 = vand.u32 %v962, 4294901760
  %964 = vmatpush.msra.mxu0 %v963
  %v965 = vand.u32 %v791, 4294901760
  %v966 = vsub.f32 %v791, %v965
  %v967 = vand.u32 %v966, 4294901760
  %968 = vmatpush.msra.mxu0 %v967
  %v969 = vand.u32 %v812, 4294901760
  %970 = vmatmul.f32.gmra.mxu0 %v969
  %v971 = vpop.f32.mrf.mxu0
  %v972 = vadd.f32 %v939, %v971
  %973 = vdwg.mxu0
  %974 = vmatpush.msra.mxu0 0.0
  %975 = vmatpush.msra.mxu0 0.0
  %976 = vmatpush.msra.mxu0 0.0
  %977 = vmatpush.msra.mxu0 0.0
  %978 = vmatpush.msra.mxu0 0.0
  %979 = vmatpush.msra.mxu0 0.0
  %980 = vmatpush.msra.mxu0 0.0
  %981 = vmatpush.msra.mxu0 0.0
  %982 = vmatpush.msra.mxu0 0.0
  %983 = vmatpush.msra.mxu0 0.0
  %984 = vmatpush.msra.mxu0 0.0
  %985 = vmatpush.msra.mxu0 0.0
  %v986 = vand.u32 %v800, 4294901760
  %987 = vmatpush.msra.mxu0 %v986
  %v988 = vand.u32 %v797, 4294901760
  %989 = vmatpush.msra.mxu0 %v988
  %v990 = vand.u32 %v794, 4294901760
  %991 = vmatpush.msra.mxu0 %v990
  %v992 = vand.u32 %v791, 4294901760
  %993 = vmatpush.msra.mxu0 %v992
  %v994 = vand.u32 %v812, 4294901760
  %995 = vmatmul.f32.gmra.mxu0 %v994
  %v996 = vpop.f32.mrf.mxu0
  %v997 = vadd.f32 %v972, %v996
  %998 = vdwg.mxu0
  %999 = vmatpush.msra.mxu0 0.0
  %1000 = vmatpush.msra.mxu0 0.0
  %1001 = vmatpush.msra.mxu0 0.0
  %1002 = vmatpush.msra.mxu0 0.0
  %1003 = vmatpush.msra.mxu0 0.0
  %1004 = vmatpush.msra.mxu0 0.0
  %1005 = vmatpush.msra.mxu0 0.0
  %1006 = vmatpush.msra.mxu0 0.0
  %1007 = vmatpush.msra.mxu0 0.0
  %1008 = vmatpush.msra.mxu0 0.0
  %1009 = vmatpush.msra.mxu0 0.0
  %1010 = vmatpush.msra.mxu0 0.0
  %v1011 = vand.u32 %v801, 4294901760
  %1012 = vmatpush.msra.mxu0 %v1011
  %v1013 = vand.u32 %v798, 4294901760
  %1014 = vmatpush.msra.mxu0 %v1013
  %v1015 = vand.u32 %v795, 4294901760
  %1016 = vmatpush.msra.mxu0 %v1015
  %v1017 = vand.u32 %v792, 4294901760
  %1018 = vmatpush.msra.mxu0 %v1017
  %v1019 = vand.u32 %v812, 4294901760
  %v1020 = vsub.f32 %v812, %v1019
  %v1021 = vand.u32 %v1020, 4294901760
  %v1022 = vsub.f32 %v1020, %v1021
  %v1023 = vand.u32 %v1022, 4294901760
  %1024 = vmatmul.f32.gmra.mxu0 %v1023
  %v1025 = vpop.f32.mrf.mxu0
  %v1026 = vadd.f32 %v808, %v1025
  %1027 = vdwg.mxu0
  %1028 = vmatpush.msra.mxu0 0.0
  %1029 = vmatpush.msra.mxu0 0.0
  %1030 = vmatpush.msra.mxu0 0.0
  %1031 = vmatpush.msra.mxu0 0.0
  %1032 = vmatpush.msra.mxu0 0.0
  %1033 = vmatpush.msra.mxu0 0.0
  %1034 = vmatpush.msra.mxu0 0.0
  %1035 = vmatpush.msra.mxu0 0.0
  %1036 = vmatpush.msra.mxu0 0.0
  %1037 = vmatpush.msra.mxu0 0.0
  %1038 = vmatpush.msra.mxu0 0.0
  %1039 = vmatpush.msra.mxu0 0.0
  %v1040 = vand.u32 %v801, 4294901760
  %v1041 = vsub.f32 %v801, %v1040
  %v1042 = vand.u32 %v1041, 4294901760
  %v1043 = vsub.f32 %v1041, %v1042
  %v1044 = vand.u32 %v1043, 4294901760
  %1045 = vmatpush.msra.mxu0 %v1044
  %v1046 = vand.u32 %v798, 4294901760
  %v1047 = vsub.f32 %v798, %v1046
  %v1048 = vand.u32 %v1047, 4294901760
  %v1049 = vsub.f32 %v1047, %v1048
  %v1050 = vand.u32 %v1049, 4294901760
  %1051 = vmatpush.msra.mxu0 %v1050
  %v1052 = vand.u32 %v795, 4294901760
  %v1053 = vsub.f32 %v795, %v1052
  %v1054 = vand.u32 %v1053, 4294901760
  %v1055 = vsub.f32 %v1053, %v1054
  %v1056 = vand.u32 %v1055, 4294901760
  %1057 = vmatpush.msra.mxu0 %v1056
  %v1058 = vand.u32 %v792, 4294901760
  %v1059 = vsub.f32 %v792, %v1058
  %v1060 = vand.u32 %v1059, 4294901760
  %v1061 = vsub.f32 %v1059, %v1060
  %v1062 = vand.u32 %v1061, 4294901760
  %1063 = vmatpush.msra.mxu0 %v1062
  %v1064 = vand.u32 %v812, 4294901760
  %1065 = vmatmul.f32.gmra.mxu0 %v1064
  %v1066 = vpop.f32.mrf.mxu0
  %v1067 = vadd.f32 %v1026, %v1066
  %1068 = vdwg.mxu0
  %1069 = vmatpush.msra.mxu0 0.0
  %1070 = vmatpush.msra.mxu0 0.0
  %1071 = vmatpush.msra.mxu0 0.0
  %1072 = vmatpush.msra.mxu0 0.0
  %1073 = vmatpush.msra.mxu0 0.0
  %1074 = vmatpush.msra.mxu0 0.0
  %1075 = vmatpush.msra.mxu0 0.0
  %1076 = vmatpush.msra.mxu0 0.0
  %1077 = vmatpush.msra.mxu0 0.0
  %1078 = vmatpush.msra.mxu0 0.0
  %1079 = vmatpush.msra.mxu0 0.0
  %1080 = vmatpush.msra.mxu0 0.0
  %v1081 = vand.u32 %v801, 4294901760
  %v1082 = vsub.f32 %v801, %v1081
  %1083 = vmatpush.msra.mxu0 %v1082
  %v1084 = vand.u32 %v798, 4294901760
  %v1085 = vsub.f32 %v798, %v1084
  %1086 = vmatpush.msra.mxu0 %v1085
  %v1087 = vand.u32 %v795, 4294901760
  %v1088 = vsub.f32 %v795, %v1087
  %1089 = vmatpush.msra.mxu0 %v1088
  %v1090 = vand.u32 %v792, 4294901760
  %v1091 = vsub.f32 %v792, %v1090
  %1092 = vmatpush.msra.mxu0 %v1091
  %v1093 = vand.u32 %v812, 4294901760
  %v1094 = vsub.f32 %v812, %v1093
  %1095 = vmatmul.f32.gmra.mxu0 %v1094
  %v1096 = vpop.f32.mrf.mxu0
  %v1097 = vadd.f32 %v1067, %v1096
  %1098 = vdwg.mxu0
  %1099 = vmatpush.msra.mxu0 0.0
  %1100 = vmatpush.msra.mxu0 0.0
  %1101 = vmatpush.msra.mxu0 0.0
  %1102 = vmatpush.msra.mxu0 0.0
  %1103 = vmatpush.msra.mxu0 0.0
  %1104 = vmatpush.msra.mxu0 0.0
  %1105 = vmatpush.msra.mxu0 0.0
  %1106 = vmatpush.msra.mxu0 0.0
  %1107 = vmatpush.msra.mxu0 0.0
  %1108 = vmatpush.msra.mxu0 0.0
  %1109 = vmatpush.msra.mxu0 0.0
  %1110 = vmatpush.msra.mxu0 0.0
  %v1111 = vand.u32 %v801, 4294901760
  %1112 = vmatpush.msra.mxu0 %v1111
  %v1113 = vand.u32 %v798, 4294901760
  %1114 = vmatpush.msra.mxu0 %v1113
  %v1115 = vand.u32 %v795, 4294901760
  %1116 = vmatpush.msra.mxu0 %v1115
  %v1117 = vand.u32 %v792, 4294901760
  %1118 = vmatpush.msra.mxu0 %v1117
  %v1119 = vand.u32 %v812, 4294901760
  %v1120 = vsub.f32 %v812, %v1119
  %v1121 = vand.u32 %v1120, 4294901760
  %1122 = vmatmul.f32.gmra.mxu0 %v1121
  %v1123 = vpop.f32.mrf.mxu0
  %v1124 = vadd.f32 %v1097, %v1123
  %1125 = vdwg.mxu0
  %1126 = vmatpush.msra.mxu0 0.0
  %1127 = vmatpush.msra.mxu0 0.0
  %1128 = vmatpush.msra.mxu0 0.0
  %1129 = vmatpush.msra.mxu0 0.0
  %1130 = vmatpush.msra.mxu0 0.0
  %1131 = vmatpush.msra.mxu0 0.0
  %1132 = vmatpush.msra.mxu0 0.0
  %1133 = vmatpush.msra.mxu0 0.0
  %1134 = vmatpush.msra.mxu0 0.0
  %1135 = vmatpush.msra.mxu0 0.0
  %1136 = vmatpush.msra.mxu0 0.0
  %1137 = vmatpush.msra.mxu0 0.0
  %v1138 = vand.u32 %v801, 4294901760
  %v1139 = vsub.f32 %v801, %v1138
  %v1140 = vand.u32 %v1139, 4294901760
  %1141 = vmatpush.msra.mxu0 %v1140
  %v1142 = vand.u32 %v798, 4294901760
  %v1143 = vsub.f32 %v798, %v1142
  %v1144 = vand.u32 %v1143, 4294901760
  %1145 = vmatpush.msra.mxu0 %v1144
  %v1146 = vand.u32 %v795, 4294901760
  %v1147 = vsub.f32 %v795, %v1146
  %v1148 = vand.u32 %v1147, 4294901760
  %1149 = vmatpush.msra.mxu0 %v1148
  %v1150 = vand.u32 %v792, 4294901760
  %v1151 = vsub.f32 %v792, %v1150
  %v1152 = vand.u32 %v1151, 4294901760
  %1153 = vmatpush.msra.mxu0 %v1152
  %v1154 = vand.u32 %v812, 4294901760
  %1155 = vmatmul.f32.gmra.mxu0 %v1154
  %v1156 = vpop.f32.mrf.mxu0
  %v1157 = vadd.f32 %v1124, %v1156
  %1158 = vdwg.mxu0
  %1159 = vmatpush.msra.mxu0 0.0
  %1160 = vmatpush.msra.mxu0 0.0
  %1161 = vmatpush.msra.mxu0 0.0
  %1162 = vmatpush.msra.mxu0 0.0
  %1163 = vmatpush.msra.mxu0 0.0
  %1164 = vmatpush.msra.mxu0 0.0
  %1165 = vmatpush.msra.mxu0 0.0
  %1166 = vmatpush.msra.mxu0 0.0
  %1167 = vmatpush.msra.mxu0 0.0
  %1168 = vmatpush.msra.mxu0 0.0
  %1169 = vmatpush.msra.mxu0 0.0
  %1170 = vmatpush.msra.mxu0 0.0
  %v1171 = vand.u32 %v801, 4294901760
  %1172 = vmatpush.msra.mxu0 %v1171
  %v1173 = vand.u32 %v798, 4294901760
  %1174 = vmatpush.msra.mxu0 %v1173
  %v1175 = vand.u32 %v795, 4294901760
  %1176 = vmatpush.msra.mxu0 %v1175
  %v1177 = vand.u32 %v792, 4294901760
  %1178 = vmatpush.msra.mxu0 %v1177
  %v1179 = vand.u32 %v812, 4294901760
  %1180 = vmatmul.f32.gmra.mxu0 %v1179
  %v1181 = vpop.f32.mrf.mxu0
  %v1182 = vadd.f32 %v1157, %v1181
  %1183 = vdwg.mxu0
  %1184 = vmatpush.msra.mxu0 0.0
  %1185 = vmatpush.msra.mxu0 0.0
  %1186 = vmatpush.msra.mxu0 0.0
  %1187 = vmatpush.msra.mxu0 0.0
  %1188 = vmatpush.msra.mxu0 0.0
  %1189 = vmatpush.msra.mxu0 0.0
  %1190 = vmatpush.msra.mxu0 0.0
  %1191 = vmatpush.msra.mxu0 0.0
  %1192 = vmatpush.msra.mxu0 0.0
  %1193 = vmatpush.msra.mxu0 0.0
  %1194 = vmatpush.msra.mxu0 0.0
  %1195 = vmatpush.msra.mxu0 0.0
  %v1196 = vand.u32 %v802, 4294901760
  %1197 = vmatpush.msra.mxu0 %v1196
  %v1198 = vand.u32 %v799, 4294901760
  %1199 = vmatpush.msra.mxu0 %v1198
  %v1200 = vand.u32 %v796, 4294901760
  %1201 = vmatpush.msra.mxu0 %v1200
  %v1202 = vand.u32 %v793, 4294901760
  %1203 = vmatpush.msra.mxu0 %v1202
  %v1204 = vand.u32 %v812, 4294901760
  %v1205 = vsub.f32 %v812, %v1204
  %v1206 = vand.u32 %v1205, 4294901760
  %v1207 = vsub.f32 %v1205, %v1206
  %v1208 = vand.u32 %v1207, 4294901760
  %1209 = vmatmul.f32.gmra.mxu0 %v1208
  %v1210 = vpop.f32.mrf.mxu0
  %v1211 = vadd.f32 %v808, %v1210
  %1212 = vdwg.mxu0
  %1213 = vmatpush.msra.mxu0 0.0
  %1214 = vmatpush.msra.mxu0 0.0
  %1215 = vmatpush.msra.mxu0 0.0
  %1216 = vmatpush.msra.mxu0 0.0
  %1217 = vmatpush.msra.mxu0 0.0
  %1218 = vmatpush.msra.mxu0 0.0
  %1219 = vmatpush.msra.mxu0 0.0
  %1220 = vmatpush.msra.mxu0 0.0
  %1221 = vmatpush.msra.mxu0 0.0
  %1222 = vmatpush.msra.mxu0 0.0
  %1223 = vmatpush.msra.mxu0 0.0
  %1224 = vmatpush.msra.mxu0 0.0
  %v1225 = vand.u32 %v802, 4294901760
  %v1226 = vsub.f32 %v802, %v1225
  %v1227 = vand.u32 %v1226, 4294901760
  %v1228 = vsub.f32 %v1226, %v1227
  %v1229 = vand.u32 %v1228, 4294901760
  %1230 = vmatpush.msra.mxu0 %v1229
  %v1231 = vand.u32 %v799, 4294901760
  %v1232 = vsub.f32 %v799, %v1231
  %v1233 = vand.u32 %v1232, 4294901760
  %v1234 = vsub.f32 %v1232, %v1233
  %v1235 = vand.u32 %v1234, 4294901760
  %1236 = vmatpush.msra.mxu0 %v1235
  %v1237 = vand.u32 %v796, 4294901760
  %v1238 = vsub.f32 %v796, %v1237
  %v1239 = vand.u32 %v1238, 4294901760
  %v1240 = vsub.f32 %v1238, %v1239
  %v1241 = vand.u32 %v1240, 4294901760
  %1242 = vmatpush.msra.mxu0 %v1241
  %v1243 = vand.u32 %v793, 4294901760
  %v1244 = vsub.f32 %v793, %v1243
  %v1245 = vand.u32 %v1244, 4294901760
  %v1246 = vsub.f32 %v1244, %v1245
  %v1247 = vand.u32 %v1246, 4294901760
  %1248 = vmatpush.msra.mxu0 %v1247
  %v1249 = vand.u32 %v812, 4294901760
  %1250 = vmatmul.f32.gmra.mxu0 %v1249
  %v1251 = vpop.f32.mrf.mxu0
  %v1252 = vadd.f32 %v1211, %v1251
  %1253 = vdwg.mxu0
  %1254 = vmatpush.msra.mxu0 0.0
  %1255 = vmatpush.msra.mxu0 0.0
  %1256 = vmatpush.msra.mxu0 0.0
  %1257 = vmatpush.msra.mxu0 0.0
  %1258 = vmatpush.msra.mxu0 0.0
  %1259 = vmatpush.msra.mxu0 0.0
  %1260 = vmatpush.msra.mxu0 0.0
  %1261 = vmatpush.msra.mxu0 0.0
  %1262 = vmatpush.msra.mxu0 0.0
  %1263 = vmatpush.msra.mxu0 0.0
  %1264 = vmatpush.msra.mxu0 0.0
  %1265 = vmatpush.msra.mxu0 0.0
  %v1266 = vand.u32 %v802, 4294901760
  %v1267 = vsub.f32 %v802, %v1266
  %1268 = vmatpush.msra.mxu0 %v1267
  %v1269 = vand.u32 %v799, 4294901760
  %v1270 = vsub.f32 %v799, %v1269
  %1271 = vmatpush.msra.mxu0 %v1270
  %v1272 = vand.u32 %v796, 4294901760
  %v1273 = vsub.f32 %v796, %v1272
  %1274 = vmatpush.msra.mxu0 %v1273
  %v1275 = vand.u32 %v793, 4294901760
  %v1276 = vsub.f32 %v793, %v1275
  %1277 = vmatpush.msra.mxu0 %v1276
  %v1278 = vand.u32 %v812, 4294901760
  %v1279 = vsub.f32 %v812, %v1278
  %1280 = vmatmul.f32.gmra.mxu0 %v1279
  %v1281 = vpop.f32.mrf.mxu0
  %v1282 = vadd.f32 %v1252, %v1281
  %1283 = vdwg.mxu0
  %1284 = vmatpush.msra.mxu0 0.0
  %1285 = vmatpush.msra.mxu0 0.0
  %1286 = vmatpush.msra.mxu0 0.0
  %1287 = vmatpush.msra.mxu0 0.0
  %1288 = vmatpush.msra.mxu0 0.0
  %1289 = vmatpush.msra.mxu0 0.0
  %1290 = vmatpush.msra.mxu0 0.0
  %1291 = vmatpush.msra.mxu0 0.0
  %1292 = vmatpush.msra.mxu0 0.0
  %1293 = vmatpush.msra.mxu0 0.0
  %1294 = vmatpush.msra.mxu0 0.0
  %1295 = vmatpush.msra.mxu0 0.0
  %v1296 = vand.u32 %v802, 4294901760
  %1297 = vmatpush.msra.mxu0 %v1296
  %v1298 = vand.u32 %v799, 4294901760
  %1299 = vmatpush.msra.mxu0 %v1298
  %v1300 = vand.u32 %v796, 4294901760
  %1301 = vmatpush.msra.mxu0 %v1300
  %v1302 = vand.u32 %v793, 4294901760
  %1303 = vmatpush.msra.mxu0 %v1302
  %v1304 = vand.u32 %v812, 4294901760
  %v1305 = vsub.f32 %v812, %v1304
  %v1306 = vand.u32 %v1305, 4294901760
  %1307 = vmatmul.f32.gmra.mxu0 %v1306
  %v1308 = vpop.f32.mrf.mxu0
  %v1309 = vadd.f32 %v1282, %v1308
  %1310 = vdwg.mxu0
  %1311 = vmatpush.msra.mxu0 0.0
  %1312 = vmatpush.msra.mxu0 0.0
  %1313 = vmatpush.msra.mxu0 0.0
  %1314 = vmatpush.msra.mxu0 0.0
  %1315 = vmatpush.msra.mxu0 0.0
  %1316 = vmatpush.msra.mxu0 0.0
  %1317 = vmatpush.msra.mxu0 0.0
  %1318 = vmatpush.msra.mxu0 0.0
  %1319 = vmatpush.msra.mxu0 0.0
  %1320 = vmatpush.msra.mxu0 0.0
  %1321 = vmatpush.msra.mxu0 0.0
  %1322 = vmatpush.msra.mxu0 0.0
  %v1323 = vand.u32 %v802, 4294901760
  %v1324 = vsub.f32 %v802, %v1323
  %v1325 = vand.u32 %v1324, 4294901760
  %1326 = vmatpush.msra.mxu0 %v1325
  %v1327 = vand.u32 %v799, 4294901760
  %v1328 = vsub.f32 %v799, %v1327
  %v1329 = vand.u32 %v1328, 4294901760
  %1330 = vmatpush.msra.mxu0 %v1329
  %v1331 = vand.u32 %v796, 4294901760
  %v1332 = vsub.f32 %v796, %v1331
  %v1333 = vand.u32 %v1332, 4294901760
  %1334 = vmatpush.msra.mxu0 %v1333
  %v1335 = vand.u32 %v793, 4294901760
  %v1336 = vsub.f32 %v793, %v1335
  %v1337 = vand.u32 %v1336, 4294901760
  %1338 = vmatpush.msra.mxu0 %v1337
  %v1339 = vand.u32 %v812, 4294901760
  %1340 = vmatmul.f32.gmra.mxu0 %v1339
  %v1341 = vpop.f32.mrf.mxu0
  %v1342 = vadd.f32 %v1309, %v1341
  %1343 = vdwg.mxu0
  %1344 = vmatpush.msra.mxu0 0.0
  %1345 = vmatpush.msra.mxu0 0.0
  %1346 = vmatpush.msra.mxu0 0.0
  %1347 = vmatpush.msra.mxu0 0.0
  %1348 = vmatpush.msra.mxu0 0.0
  %1349 = vmatpush.msra.mxu0 0.0
  %1350 = vmatpush.msra.mxu0 0.0
  %1351 = vmatpush.msra.mxu0 0.0
  %1352 = vmatpush.msra.mxu0 0.0
  %1353 = vmatpush.msra.mxu0 0.0
  %1354 = vmatpush.msra.mxu0 0.0
  %1355 = vmatpush.msra.mxu0 0.0
  %v1356 = vand.u32 %v802, 4294901760
  %1357 = vmatpush.msra.mxu0 %v1356
  %v1358 = vand.u32 %v799, 4294901760
  %1359 = vmatpush.msra.mxu0 %v1358
  %v1360 = vand.u32 %v796, 4294901760
  %1361 = vmatpush.msra.mxu0 %v1360
  %v1362 = vand.u32 %v793, 4294901760
  %1363 = vmatpush.msra.mxu0 %v1362
  %v1364 = vand.u32 %v812, 4294901760
  %1365 = vmatmul.f32.gmra.mxu0 %v1364
  %v1366 = vpop.f32.mrf.mxu0
  %v1367 = vadd.f32 %v1342, %v1366
  %1368 = vdwg.mxu0
  %v1369 = vsel %vm64, %v997, -inf
  %v1370 = vrot.slane %v1369, 4
  %v1371 = vmax.f32 %v1369, %v1370
  %v1372 = vrot.slane %v1371, 2
  %v1373 = vmax.f32 %v1371, %v1372
  %v1374 = vrot.slane %v1373, 1
  %v1375 = vmax.f32 %v1373, %v1374
  %v1376 = vsel %vm64, %v1182, -inf
  %v1377 = vrot.slane %v1376, 4
  %v1378 = vmax.f32 %v1376, %v1377
  %v1379 = vrot.slane %v1378, 2
  %v1380 = vmax.f32 %v1378, %v1379
  %v1381 = vrot.slane %v1380, 1
  %v1382 = vmax.f32 %v1380, %v1381
  %v1383 = vsel %vm64, %v1367, -inf
  %v1384 = vrot.slane %v1383, 4
  %v1385 = vmax.f32 %v1383, %v1384
  %v1386 = vrot.slane %v1385, 2
  %v1387 = vmax.f32 %v1385, %v1386
  %v1388 = vrot.slane %v1387, 1
  %v1389 = vmax.f32 %v1387, %v1388
  %v1390 = vlaneseq
  %v1391 = vshrl.u32 %v1390, 7
  %vm1392 = vcmp.eq.f32.partialorder %v997, %v1375
  %vm1393 = vcmp.eq.f32.partialorder %v1182, %v1382
  %vm1394 = vcmp.eq.f32.partialorder %v1367, %v1389
  %v1395 = vsel %vm1392, %v1391, 5
  %v1396 = vsel %vm1393, %v1391, 5
  %v1397 = vsel %vm1394, %v1391, 5
  %v1398 = vsel %vm64, %v1395, 2147483647
  %v1399 = vrot.slane %v1398, 4
  %vm1400 = vcmp.lt.s32.totalorder %v1398, %v1399
  %v1401 = vsel %vm1400, %v1398, %v1399
  %v1402 = vrot.slane %v1401, 2
  %vm1403 = vcmp.lt.s32.totalorder %v1401, %v1402
  %v1404 = vsel %vm1403, %v1401, %v1402
  %v1405 = vrot.slane %v1404, 1
  %vm1406 = vcmp.lt.s32.totalorder %v1404, %v1405
  %v1407 = vsel %vm1406, %v1404, %v1405
  %v1408 = vsel %vm64, %v1396, 2147483647
  %v1409 = vrot.slane %v1408, 4
  %vm1410 = vcmp.lt.s32.totalorder %v1408, %v1409
  %v1411 = vsel %vm1410, %v1408, %v1409
  %v1412 = vrot.slane %v1411, 2
  %vm1413 = vcmp.lt.s32.totalorder %v1411, %v1412
  %v1414 = vsel %vm1413, %v1411, %v1412
  %v1415 = vrot.slane %v1414, 1
  %vm1416 = vcmp.lt.s32.totalorder %v1414, %v1415
  %v1417 = vsel %vm1416, %v1414, %v1415
  %v1418 = vsel %vm64, %v1397, 2147483647
  %v1419 = vrot.slane %v1418, 4
  %vm1420 = vcmp.lt.s32.totalorder %v1418, %v1419
  %v1421 = vsel %vm1420, %v1418, %v1419
  %v1422 = vrot.slane %v1421, 2
  %vm1423 = vcmp.lt.s32.totalorder %v1421, %v1422
  %v1424 = vsel %vm1423, %v1421, %v1422
  %v1425 = vrot.slane %v1424, 1
  %vm1426 = vcmp.lt.s32.totalorder %v1424, %v1425
  %v1427 = vsel %vm1426, %v1424, %v1425
  %vm1428 = vcmp.eq.s32.totalorder %v1391, %v1407
  %vm1429 = vcmp.eq.s32.totalorder %v1391, %v1417
  %vm1430 = vcmp.eq.s32.totalorder %v1391, %v1427
  %v1431 = vsel %vm1428, 1, 0
  %v1432 = vsel %vm1429, 1, 0
  %v1433 = vsel %vm1430, 1, 0
  %v1434 = vcvt.s32.f32 %v1431
  %v1435 = vcvt.s32.f32 %v1432
  %v1436 = vcvt.s32.f32 %v1433
  %v1437 = vcvt.s32.f32 %v1407
  %v1438 = vcvt.s32.f32 %v1417
  %v1439 = vcvt.s32.f32 %v1427
  %vm1440 = vcmp.eq.s32.totalorder %v1407, 0
  %vm1441 = vcmp.eq.s32.totalorder %v1417, 0
  %vm1442 = vcmp.eq.s32.totalorder %v1427, 0
  %vm1443 = vcmp.eq.s32.totalorder %v1407, 1
  %vm1444 = vcmp.eq.s32.totalorder %v1417, 1
  %vm1445 = vcmp.eq.s32.totalorder %v1427, 1
  %vm1446 = vmor %vm1440, %vm1443
  %vm1447 = vmor %vm1441, %vm1444
  %vm1448 = vmor %vm1442, %vm1445
  %v1449 = vsel %vm1446, 1, 0
  %v1450 = vsel %vm1447, 1, 0
  %v1451 = vsel %vm1448, 1, 0
  %vm1452 = vcmp.eq.s32.totalorder %v1449, 1
  %vm1453 = vcmp.eq.s32.totalorder %v1450, 1
  %vm1454 = vcmp.eq.s32.totalorder %v1451, 1
  %v1455 = vsel %vm1452, %v20, -1.0
  %v1456 = vsel %vm1453, %v21, -1.0
  %v1457 = vsel %vm1454, %v22, -1.0
  %v1458 = vsel %vm1446, %v1437, -1.0
  %v1459 = vsel %vm1447, %v1438, -1.0
  %v1460 = vsel %vm1448, %v1439, -1.0
  %1461 = vst [vmem:[%s5] sm:$0x1f] %v997
  %1462 = vst [vmem:[%s5 + $0x8] sm:$0x1f] %v1182
  %1463 = vst [vmem:[%s5 + $0x10] sm:$0x1f] %v1367
  %v1464 = vrot.slane %v20, 3
  %v1465 = vrot.slane %v21, 3
  %v1466 = vrot.slane %v22, 3
  %1470 = vst [vmem:[%s5] sm:$0xe0] %v1464
  %1471 = vst [vmem:[%s5 + $0x8] sm:$0xe0] %v1465
  %1472 = vst [vmem:[%s5 + $0x10] sm:$0xe0] %v1466
  %1473 = vst [vmem:[%s5 + $0x18] sm:$0x3] %v1464
  %1474 = vst [vmem:[%s5 + $0x20] sm:$0x3] %v1465
  %1475 = vst [vmem:[%s5 + $0x28] sm:$0x3] %v1466
  %v1479 = vrot.slane %v1434, 6
  %v1480 = vrot.slane %v1435, 6
  %v1481 = vrot.slane %v1436, 6
  %1485 = vst [vmem:[%s5 + $0x18] sm:$0x7c] %v1479
  %1486 = vst [vmem:[%s5 + $0x20] sm:$0x7c] %v1480
  %1487 = vst [vmem:[%s5 + $0x28] sm:$0x7c] %v1481
  %v1491 = vrot.slane %v1455, 1
  %v1492 = vrot.slane %v1456, 1
  %v1493 = vrot.slane %v1457, 1
  %1497 = vst [vmem:[%s5 + $0x18] sm:$0x80] %v1491
  %1498 = vst [vmem:[%s5 + $0x20] sm:$0x80] %v1492
  %1499 = vst [vmem:[%s5 + $0x28] sm:$0x80] %v1493
  %1500 = vst [vmem:[%s5 + $0x30] sm:$0xf] %v1491
  %1501 = vst [vmem:[%s5 + $0x38] sm:$0xf] %v1492
  %1502 = vst [vmem:[%s5 + $0x40] sm:$0xf] %v1493
  %v1506 = vrot.slane %v1459, 7
  %v1507 = vrot.slane %v1460, 6
  %vm1508 = vcmask 1040384
  %v1509 = vsel %vm1508, %v1458, %v1506
  %vm1510 = vcmask 1041408
  %v1511 = vsel %vm1510, %v1509, %v1507
  %v1513 = vlaneseq
  %vm1514 = vcmp.ge.s32.totalorder %v1513, 0
  %vm1515 = vcmp.lt.s32.totalorder %v1513, 384
  %vm1516 = vmand %vm1514, %vm1515
  %s1517 = scalar_lea.vmem %s5, 52
  %1518 = vst.msk [vmem:[%s1517] ss:$8 sm:$0x7] %vm1516, %v1511
  %1519 = vst.msk [vmem:[%s1517] ss:$8 sm:$0x0] %vm1516, %v1511
  %s1520 = scalar_lea.vmem %s5, 53
  %1521 = vst.msk [vmem:[%s1520] ss:$8 sm:$0x7] %vm1516, %v1511
  %1522 = vst.msk [vmem:[%s1520] ss:$8 sm:$0x0] %vm1516, %v1511
  %v1526 = vrot.slane %v1438, 7
  %v1527 = vrot.slane %v1439, 6
  %v1528 = vsel %vm1508, %v1437, %v1526
  %v1529 = vsel %vm1510, %v1528, %v1527
  %s1531 = scalar_lea.vmem %s5, 54
  %1532 = vst.msk [vmem:[%s1531] ss:$8 sm:$0x7] %vm1516, %v1529
  %1533 = vst.msk [vmem:[%s1531] ss:$8 sm:$0x0] %vm1516, %v1529
  %v1534 = vcvt.s32.f32 %v1449
  %v1535 = vcvt.s32.f32 %v1450
  %v1536 = vcvt.s32.f32 %v1451
  %v1540 = vrot.slane %v1535, 7
  %v1541 = vrot.slane %v1536, 6
  %v1542 = vsel %vm1508, %v1534, %v1540
  %v1543 = vsel %vm1510, %v1542, %v1541
  %s1545 = scalar_lea.vmem %s5, 55
  %1546 = vst.msk [vmem:[%s1545] ss:$8 sm:$0x7] %vm1516, %v1543
  %1547 = vst.msk [vmem:[%s1545] ss:$8 sm:$0x0] %vm1516, %v1543
  // Predicated region
  $region22: #{chain_forward.1} parent=0 // pred_check
    _
  $region23: #{chain_forward.1} parent=0 // pred_check_branch
    %1549 = sbr.rel (0) target = $region25
  $region24: #{chain_forward.1} parent=0 // pred_region
    _
  $region25: #{chain_forward.1} parent=0 // pred_fallthru
    _
  // Predicated region
  $region26: #{chain_forward.1} parent=0 // pred_check
    _
  $region27: #{chain_forward.1} parent=0 // pred_check_branch
    %1551 = sbr.rel (0) target = $region29
  $region28: #{chain_forward.1} parent=0 // pred_region
    _
  $region29: #{chain_forward.1} parent=0 // pred_fallthru
    _

</llo_original>
